<compile_context>
chip_gen: v7x
topology: tpu7x:2x2x1
jax: 0.10.0
libtpu: 0.0.40
codegen_flags: <defaults>
</compile_context>

<pallas_src>
import math

import jax
import jax.numpy as jnp
import numpy as np
from jax.experimental import pallas as pl
from jax.experimental.pallas import tpu as pltpu


# ----------------------------- Pallas kernel ------------------------------ #
def make_downsampler_kernel(W, C, Bblk, growth=8, dilations=(1, 1, 1)):
    W_out = (W - 3) // 2 + 1
    BW = Bblk * W

    def conv1x3_same(h, w_ref, b_ref, dil, cout):
        # h: [Bblk, W, Cin]; w_ref: [3, Cin, cout]; zero 'same' padding along W.
        Cin = h.shape[-1]
        zp = jnp.zeros((Bblk, dil, Cin), jnp.float32)
        hp = jnp.concatenate([zp, h, zp], axis=1)              # [Bblk, W+2d, Cin]
        acc = jnp.zeros((BW, cout), jnp.float32) + b_ref[...]
        for k in range(3):                                     # 3 taps, batched M=BW
            xs = hp[:, k * dil:k * dil + W, :].reshape(BW, Cin)  # tile-aligned merge
            acc = acc + jnp.dot(xs, w_ref[k],
                                preferred_element_type=jnp.float32)
        return acc.reshape(Bblk, W, cout)

    def kernel(x_ref, wd0, bd0, wd1, bd1, wd2, bd2, wc, bc, pa, o_ref):
        h = x_ref[...]                                          # [Bblk, W, C]

        # --- 3 dilated dense blocks: channels C -> C+8 -> C+16 -> C+24 ---
        for w_ref, b_ref, dil in ((wd0, bd0, dilations[0]),
                                  (wd1, bd1, dilations[1]),
                                  (wd2, bd2, dilations[2])):
            new = jnp.maximum(conv1x3_same(h, w_ref, b_ref, dil, growth), 0.0)
            h = jnp.concatenate([h, new], axis=-1)              # dense connection

        # --- Conv2d(C+24, C, K=(1,3), S=(1,2)), valid padding ---
        # Compute the stride-1 'same' conv (keeps all reshapes tile-aligned);
        # the valid stride-2 outputs are exactly its rows 1, 3, ..., 2*W_out-1.
        y_full = conv1x3_same(h, wc, bc, 1, C)                  # [Bblk, W, C]
        y = jnp.concatenate(
            [y_full[:, 2 * t + 1:2 * t + 2, :] for t in range(W_out)], axis=1)

        # --- F.layer_norm(x, [x.shape[-1]]): over the time axis, no affine ---
        mu = jnp.mean(y, axis=1, keepdims=True)
        var = jnp.mean((y - mu) ** 2, axis=1, keepdims=True)    # two-pass variance
        y = (y - mu) * jax.lax.rsqrt(var + 1e-5)

        # --- prelu with a single scalar slope ---
        a = pa[...]                                             # (1, 1), broadcasts
        o_ref[...] = jnp.where(y >= 0.0, y, a * y)

    return kernel


def downsampler_pallas(x, params):
    """x: [B, C, H, W] float32 -> [B, C, H, (W-3)//2+1] float32."""
    B, C, H, W = x.shape
    assert W % 8 == 0 and W >= 8, "time axis must be a multiple of 8 here"
    N = B * H
    W_out = (W - 3) // 2 + 1

    # Batch many sequences per grid step; keep >=2 parallel steps (v7x 2 TCs).
    n_steps = 2 if (N % 2 == 0 and N >= 2) else 1
    Bblk = N // n_steps

    x_seq = jnp.transpose(x, (0, 2, 3, 1)).reshape(N, W, C)     # channels-last seqs

    kernel = make_downsampler_kernel(W, C, Bblk)

    def full_spec(shape):
        nd = len(shape)
        return pl.BlockSpec(shape, lambda i, _nd=nd: (0,) * _nd)

    p = params
    args = (x_seq, p["wd0"], p["bd0"], p["wd1"], p["bd1"], p["wd2"], p["bd2"],
            p["wc"], p["bc"], p["a"])
    in_specs = [pl.BlockSpec((Bblk, W, C), lambda i: (i, 0, 0))]
    in_specs += [full_spec(a.shape) for a in args[1:]]

    out_seq = pl.pallas_call(
        kernel,
        out_shape=jax.ShapeDtypeStruct((N, W_out, C), jnp.float32),
        grid=(n_steps,),
        in_specs=in_specs,
        out_specs=pl.BlockSpec((Bblk, W_out, C), lambda i: (i, 0, 0)),
        compiler_params=pltpu.CompilerParams(dimension_semantics=("parallel",)),
    )(*args)

    return jnp.transpose(out_seq.reshape(B, H, W_out, C), (0, 3, 1, 2))


# --------------------------- pure-JAX reference ---------------------------- #
def _downsampler_ref(x, params):
    def conv(h, w, b, stride, pad):
        # h: [B, Cin, H, W]; w: [3, Cin, Cout] -> OIHW [Cout, Cin, 1, 3]
        wt = jnp.transpose(w, (2, 1, 0))[:, :, None, :]
        y = jax.lax.conv_general_dilated(
            h, wt, window_strides=(1, stride),
            padding=((0, 0), (pad, pad)),
            dimension_numbers=("NCHW", "OIHW", "NCHW"),
            precision=jax.lax.Precision.HIGHEST)
        return y + b.reshape(1, -1, 1, 1)

    h = x
    for i in range(3):
        new = jnp.maximum(conv(h, params[f"wd{i}"], params[f"bd{i}"], 1, 1), 0.0)
        h = jnp.concatenate([h, new], axis=1)
    y = conv(h, params["wc"], params["bc"], 2, 0)
    mu = y.mean(-1, keepdims=True)
    var = ((y - mu) ** 2).mean(-1, keepdims=True)
    y = (y - mu) / jnp.sqrt(var + 1e-5)
    a = params["a"][0, 0]
    return jnp.where(y >= 0.0, y, a * y)


# ------------------------------ param init --------------------------------- #
def init_params(key, C, growth=8):
    keys = jax.random.split(key, 8)

    def nrm(k, shape, fan_in):
        return jax.random.normal(k, shape, jnp.float32) / math.sqrt(fan_in)

    p = {}
    for i in range(3):
        cin = C + i * growth
        p[f"wd{i}"] = nrm(keys[2 * i], (3, cin, growth), 3 * cin)
        p[f"bd{i}"] = 0.1 * jax.random.normal(keys[2 * i + 1], (1, growth),
                                              jnp.float32)
    cf = C + 3 * growth
    p["wc"] = nrm(keys[6], (3, cf, C), 3 * cf)
    p["bc"] = 0.1 * jax.random.normal(keys[7], (1, C), jnp.float32)
    p["a"] = jnp.full((1, 1), 0.25, jnp.float32)                # PReLU slope
    return p


# ---------------------------------- main ----------------------------------- #
if __name__ == "__main__":
    # x: [batch, channels(=64, module default), num_frames, time_frames]
    B, C, H, W = 2, 64, 4, 16

    key = jax.random.PRNGKey(0)
    kx, kp = jax.random.split(key)
    x = jax.random.normal(kx, (B, C, H, W), jnp.float32)
    params = init_params(kp, C)

    out = downsampler_pallas(x, params)
    out = jax.block_until_ready(out)

    W_out = (W - 3) // 2 + 1
    assert out.shape == (B, C, H, W_out) and out.dtype == jnp.float32

    ref = _downsampler_ref(x, params)
    np.testing.assert_allclose(np.asarray(out), np.asarray(ref),
                               rtol=2e-3, atol=2e-3)

    print("KERNEL_OK")
</pallas_src>

<mosaic_0001>
module attributes {stable_mosaic.version = 11 : i64} {
  func.func @kernel(%arg0: i32, %arg1: memref<4x16x64xf32, #tpu.memory_space<vmem>>, %arg2: memref<3x64x8xf32, #tpu.memory_space<vmem>>, %arg3: memref<1x8xf32, #tpu.memory_space<vmem>>, %arg4: memref<3x72x8xf32, #tpu.memory_space<vmem>>, %arg5: memref<1x8xf32, #tpu.memory_space<vmem>>, %arg6: memref<3x80x8xf32, #tpu.memory_space<vmem>>, %arg7: memref<1x8xf32, #tpu.memory_space<vmem>>, %arg8: memref<3x88x64xf32, #tpu.memory_space<vmem>>, %arg9: memref<1x64xf32, #tpu.memory_space<vmem>>, %arg10: memref<1x1xf32, #tpu.memory_space<vmem>>, %arg11: memref<4x7x64xf32, #tpu.memory_space<vmem>>) attributes {dimension_semantics = [#tpu.dimension_semantics<parallel>], iteration_bounds = array<i64: 2>, scalar_prefetch = 0 : i64, scratch_operands = 0 : i64, tpu.core_type = #tpu.core_type<tc>, window_params = [{transform_indices = @transform_0, window_bounds = array<i64: 4, 16, 64>}, {pipeline_mode = #tpu.pipeline_mode<synchronous>, transform_indices = @transform_1, window_bounds = array<i64: 3, 64, 8>}, {pipeline_mode = #tpu.pipeline_mode<synchronous>, transform_indices = @transform_2, window_bounds = array<i64: 1, 8>}, {pipeline_mode = #tpu.pipeline_mode<synchronous>, transform_indices = @transform_3, window_bounds = array<i64: 3, 72, 8>}, {pipeline_mode = #tpu.pipeline_mode<synchronous>, transform_indices = @transform_4, window_bounds = array<i64: 1, 8>}, {pipeline_mode = #tpu.pipeline_mode<synchronous>, transform_indices = @transform_5, window_bounds = array<i64: 3, 80, 8>}, {pipeline_mode = #tpu.pipeline_mode<synchronous>, transform_indices = @transform_6, window_bounds = array<i64: 1, 8>}, {pipeline_mode = #tpu.pipeline_mode<synchronous>, transform_indices = @transform_7, window_bounds = array<i64: 3, 88, 64>}, {pipeline_mode = #tpu.pipeline_mode<synchronous>, transform_indices = @transform_8, window_bounds = array<i64: 1, 64>}, {pipeline_mode = #tpu.pipeline_mode<synchronous>, transform_indices = @transform_9, window_bounds = array<i64: 1, 1>}, {transform_indices = @transform_10, window_bounds = array<i64: 4, 7, 64>}]} {
    %c0 = arith.constant 0 : index
    %c0_0 = arith.constant 0 : index
    %c0_1 = arith.constant 0 : index
    %0 = vector.load %arg1[%c0, %c0_0, %c0_1] : memref<4x16x64xf32, #tpu.memory_space<vmem>>, vector<4x16x64xf32>
    %cst = arith.constant 0.000000e+00 : f32
    %1 = vector.broadcast %cst : f32 to vector<4x1x64xf32>
    %2 = tpu.concatenate %1, %0, %1 in 1 : vector<4x1x64xf32>, vector<4x16x64xf32>, vector<4x1x64xf32> -> vector<4x18x64xf32>
    %cst_2 = arith.constant 0.000000e+00 : f32
    %3 = vector.broadcast %cst_2 : f32 to vector<64x8xf32>
    %c0_3 = arith.constant 0 : index
    %c0_4 = arith.constant 0 : index
    %4 = vector.load %arg3[%c0_3, %c0_4] : memref<1x8xf32, #tpu.memory_space<vmem>>, vector<1x8xf32>
    %5 = vector.broadcast %4 : vector<1x8xf32> to vector<64x8xf32>
    %6 = arith.addf %3, %5 : vector<64x8xf32>
    %7 = vector.extract_strided_slice %2 {offsets = [0, 0, 0], sizes = [4, 16, 64], strides = [1, 1, 1]} : vector<4x18x64xf32> to vector<4x16x64xf32>
    %8 = vector.shape_cast %7 : vector<4x16x64xf32> to vector<64x64xf32>
    %c0_5 = arith.constant 0 : index
    %c0_6 = arith.constant 0 : index
    %c0_7 = arith.constant 0 : index
    %9 = vector.load %arg2[%c0_5, %c0_6, %c0_7] : memref<3x64x8xf32, #tpu.memory_space<vmem>>, vector<1x64x8xf32>
    %10 = vector.shape_cast %9 : vector<1x64x8xf32> to vector<64x8xf32>
    %cst_8 = arith.constant dense<0.000000e+00> : vector<64x8xf32>
    %11 = tpu.matmul %8, %10, %cst_8 {dimension_numbers = #tpu.dot_dimension_numbers<[1], [0], [0], [1], [0, 0, 1, 1], [], []>} : vector<64x64xf32>, vector<64x8xf32>, vector<64x8xf32> -> vector<64x8xf32>
    %12 = arith.addf %6, %11 : vector<64x8xf32>
    %13 = vector.extract_strided_slice %2 {offsets = [0, 1, 0], sizes = [4, 16, 64], strides = [1, 1, 1]} : vector<4x18x64xf32> to vector<4x16x64xf32>
    %14 = vector.shape_cast %13 : vector<4x16x64xf32> to vector<64x64xf32>
    %c1 = arith.constant 1 : index
    %c0_9 = arith.constant 0 : index
    %c0_10 = arith.constant 0 : index
    %15 = vector.load %arg2[%c1, %c0_9, %c0_10] : memref<3x64x8xf32, #tpu.memory_space<vmem>>, vector<1x64x8xf32>
    %16 = vector.shape_cast %15 : vector<1x64x8xf32> to vector<64x8xf32>
    %cst_11 = arith.constant dense<0.000000e+00> : vector<64x8xf32>
    %17 = tpu.matmul %14, %16, %cst_11 {dimension_numbers = #tpu.dot_dimension_numbers<[1], [0], [0], [1], [0, 0, 1, 1], [], []>} : vector<64x64xf32>, vector<64x8xf32>, vector<64x8xf32> -> vector<64x8xf32>
    %18 = arith.addf %12, %17 : vector<64x8xf32>
    %19 = vector.extract_strided_slice %2 {offsets = [0, 2, 0], sizes = [4, 16, 64], strides = [1, 1, 1]} : vector<4x18x64xf32> to vector<4x16x64xf32>
    %20 = vector.shape_cast %19 : vector<4x16x64xf32> to vector<64x64xf32>
    %c2 = arith.constant 2 : index
    %c0_12 = arith.constant 0 : index
    %c0_13 = arith.constant 0 : index
    %21 = vector.load %arg2[%c2, %c0_12, %c0_13] : memref<3x64x8xf32, #tpu.memory_space<vmem>>, vector<1x64x8xf32>
    %22 = vector.shape_cast %21 : vector<1x64x8xf32> to vector<64x8xf32>
    %cst_14 = arith.constant dense<0.000000e+00> : vector<64x8xf32>
    %23 = tpu.matmul %20, %22, %cst_14 {dimension_numbers = #tpu.dot_dimension_numbers<[1], [0], [0], [1], [0, 0, 1, 1], [], []>} : vector<64x64xf32>, vector<64x8xf32>, vector<64x8xf32> -> vector<64x8xf32>
    %24 = arith.addf %18, %23 : vector<64x8xf32>
    %25 = vector.shape_cast %24 : vector<64x8xf32> to vector<4x16x8xf32>
    %cst_15 = arith.constant 0.000000e+00 : f32
    %26 = vector.broadcast %cst_15 : f32 to vector<4x16x8xf32>
    %27 = arith.maximumf %25, %26 : vector<4x16x8xf32>
    %28 = tpu.concatenate %0, %27 in 2 : vector<4x16x64xf32>, vector<4x16x8xf32> -> vector<4x16x72xf32>
    %cst_16 = arith.constant 0.000000e+00 : f32
    %29 = vector.broadcast %cst_16 : f32 to vector<4x1x72xf32>
    %30 = tpu.concatenate %29, %28, %29 in 1 : vector<4x1x72xf32>, vector<4x16x72xf32>, vector<4x1x72xf32> -> vector<4x18x72xf32>
    %cst_17 = arith.constant 0.000000e+00 : f32
    %31 = vector.broadcast %cst_17 : f32 to vector<64x8xf32>
    %c0_18 = arith.constant 0 : index
    %c0_19 = arith.constant 0 : index
    %32 = vector.load %arg5[%c0_18, %c0_19] : memref<1x8xf32, #tpu.memory_space<vmem>>, vector<1x8xf32>
    %33 = vector.broadcast %32 : vector<1x8xf32> to vector<64x8xf32>
    %34 = arith.addf %31, %33 : vector<64x8xf32>
    %35 = vector.extract_strided_slice %30 {offsets = [0, 0, 0], sizes = [4, 16, 72], strides = [1, 1, 1]} : vector<4x18x72xf32> to vector<4x16x72xf32>
    %36 = vector.shape_cast %35 : vector<4x16x72xf32> to vector<64x72xf32>
    %c0_20 = arith.constant 0 : index
    %c0_21 = arith.constant 0 : index
    %c0_22 = arith.constant 0 : index
    %37 = vector.load %arg4[%c0_20, %c0_21, %c0_22] : memref<3x72x8xf32, #tpu.memory_space<vmem>>, vector<1x72x8xf32>
    %38 = vector.shape_cast %37 : vector<1x72x8xf32> to vector<72x8xf32>
    %cst_23 = arith.constant dense<0.000000e+00> : vector<64x8xf32>
    %39 = tpu.matmul %36, %38, %cst_23 {dimension_numbers = #tpu.dot_dimension_numbers<[1], [0], [0], [1], [0, 0, 1, 1], [], []>} : vector<64x72xf32>, vector<72x8xf32>, vector<64x8xf32> -> vector<64x8xf32>
    %40 = arith.addf %34, %39 : vector<64x8xf32>
    %41 = vector.extract_strided_slice %30 {offsets = [0, 1, 0], sizes = [4, 16, 72], strides = [1, 1, 1]} : vector<4x18x72xf32> to vector<4x16x72xf32>
    %42 = vector.shape_cast %41 : vector<4x16x72xf32> to vector<64x72xf32>
    %c1_24 = arith.constant 1 : index
    %c0_25 = arith.constant 0 : index
    %c0_26 = arith.constant 0 : index
    %43 = vector.load %arg4[%c1_24, %c0_25, %c0_26] : memref<3x72x8xf32, #tpu.memory_space<vmem>>, vector<1x72x8xf32>
    %44 = vector.shape_cast %43 : vector<1x72x8xf32> to vector<72x8xf32>
    %cst_27 = arith.constant dense<0.000000e+00> : vector<64x8xf32>
    %45 = tpu.matmul %42, %44, %cst_27 {dimension_numbers = #tpu.dot_dimension_numbers<[1], [0], [0], [1], [0, 0, 1, 1], [], []>} : vector<64x72xf32>, vector<72x8xf32>, vector<64x8xf32> -> vector<64x8xf32>
    %46 = arith.addf %40, %45 : vector<64x8xf32>
    %47 = vector.extract_strided_slice %30 {offsets = [0, 2, 0], sizes = [4, 16, 72], strides = [1, 1, 1]} : vector<4x18x72xf32> to vector<4x16x72xf32>
    %48 = vector.shape_cast %47 : vector<4x16x72xf32> to vector<64x72xf32>
    %c2_28 = arith.constant 2 : index
    %c0_29 = arith.constant 0 : index
    %c0_30 = arith.constant 0 : index
    %49 = vector.load %arg4[%c2_28, %c0_29, %c0_30] : memref<3x72x8xf32, #tpu.memory_space<vmem>>, vector<1x72x8xf32>
    %50 = vector.shape_cast %49 : vector<1x72x8xf32> to vector<72x8xf32>
    %cst_31 = arith.constant dense<0.000000e+00> : vector<64x8xf32>
    %51 = tpu.matmul %48, %50, %cst_31 {dimension_numbers = #tpu.dot_dimension_numbers<[1], [0], [0], [1], [0, 0, 1, 1], [], []>} : vector<64x72xf32>, vector<72x8xf32>, vector<64x8xf32> -> vector<64x8xf32>
    %52 = arith.addf %46, %51 : vector<64x8xf32>
    %53 = vector.shape_cast %52 : vector<64x8xf32> to vector<4x16x8xf32>
    %cst_32 = arith.constant 0.000000e+00 : f32
    %54 = vector.broadcast %cst_32 : f32 to vector<4x16x8xf32>
    %55 = arith.maximumf %53, %54 : vector<4x16x8xf32>
    %56 = tpu.concatenate %28, %55 in 2 : vector<4x16x72xf32>, vector<4x16x8xf32> -> vector<4x16x80xf32>
    %cst_33 = arith.constant 0.000000e+00 : f32
    %57 = vector.broadcast %cst_33 : f32 to vector<4x1x80xf32>
    %58 = tpu.concatenate %57, %56, %57 in 1 : vector<4x1x80xf32>, vector<4x16x80xf32>, vector<4x1x80xf32> -> vector<4x18x80xf32>
    %cst_34 = arith.constant 0.000000e+00 : f32
    %59 = vector.broadcast %cst_34 : f32 to vector<64x8xf32>
    %c0_35 = arith.constant 0 : index
    %c0_36 = arith.constant 0 : index
    %60 = vector.load %arg7[%c0_35, %c0_36] : memref<1x8xf32, #tpu.memory_space<vmem>>, vector<1x8xf32>
    %61 = vector.broadcast %60 : vector<1x8xf32> to vector<64x8xf32>
    %62 = arith.addf %59, %61 : vector<64x8xf32>
    %63 = vector.extract_strided_slice %58 {offsets = [0, 0, 0], sizes = [4, 16, 80], strides = [1, 1, 1]} : vector<4x18x80xf32> to vector<4x16x80xf32>
    %64 = vector.shape_cast %63 : vector<4x16x80xf32> to vector<64x80xf32>
    %c0_37 = arith.constant 0 : index
    %c0_38 = arith.constant 0 : index
    %c0_39 = arith.constant 0 : index
    %65 = vector.load %arg6[%c0_37, %c0_38, %c0_39] : memref<3x80x8xf32, #tpu.memory_space<vmem>>, vector<1x80x8xf32>
    %66 = vector.shape_cast %65 : vector<1x80x8xf32> to vector<80x8xf32>
    %cst_40 = arith.constant dense<0.000000e+00> : vector<64x8xf32>
    %67 = tpu.matmul %64, %66, %cst_40 {dimension_numbers = #tpu.dot_dimension_numbers<[1], [0], [0], [1], [0, 0, 1, 1], [], []>} : vector<64x80xf32>, vector<80x8xf32>, vector<64x8xf32> -> vector<64x8xf32>
    %68 = arith.addf %62, %67 : vector<64x8xf32>
    %69 = vector.extract_strided_slice %58 {offsets = [0, 1, 0], sizes = [4, 16, 80], strides = [1, 1, 1]} : vector<4x18x80xf32> to vector<4x16x80xf32>
    %70 = vector.shape_cast %69 : vector<4x16x80xf32> to vector<64x80xf32>
    %c1_41 = arith.constant 1 : index
    %c0_42 = arith.constant 0 : index
    %c0_43 = arith.constant 0 : index
    %71 = vector.load %arg6[%c1_41, %c0_42, %c0_43] : memref<3x80x8xf32, #tpu.memory_space<vmem>>, vector<1x80x8xf32>
    %72 = vector.shape_cast %71 : vector<1x80x8xf32> to vector<80x8xf32>
    %cst_44 = arith.constant dense<0.000000e+00> : vector<64x8xf32>
    %73 = tpu.matmul %70, %72, %cst_44 {dimension_numbers = #tpu.dot_dimension_numbers<[1], [0], [0], [1], [0, 0, 1, 1], [], []>} : vector<64x80xf32>, vector<80x8xf32>, vector<64x8xf32> -> vector<64x8xf32>
    %74 = arith.addf %68, %73 : vector<64x8xf32>
    %75 = vector.extract_strided_slice %58 {offsets = [0, 2, 0], sizes = [4, 16, 80], strides = [1, 1, 1]} : vector<4x18x80xf32> to vector<4x16x80xf32>
    %76 = vector.shape_cast %75 : vector<4x16x80xf32> to vector<64x80xf32>
    %c2_45 = arith.constant 2 : index
    %c0_46 = arith.constant 0 : index
    %c0_47 = arith.constant 0 : index
    %77 = vector.load %arg6[%c2_45, %c0_46, %c0_47] : memref<3x80x8xf32, #tpu.memory_space<vmem>>, vector<1x80x8xf32>
    %78 = vector.shape_cast %77 : vector<1x80x8xf32> to vector<80x8xf32>
    %cst_48 = arith.constant dense<0.000000e+00> : vector<64x8xf32>
    %79 = tpu.matmul %76, %78, %cst_48 {dimension_numbers = #tpu.dot_dimension_numbers<[1], [0], [0], [1], [0, 0, 1, 1], [], []>} : vector<64x80xf32>, vector<80x8xf32>, vector<64x8xf32> -> vector<64x8xf32>
    %80 = arith.addf %74, %79 : vector<64x8xf32>
    %81 = vector.shape_cast %80 : vector<64x8xf32> to vector<4x16x8xf32>
    %cst_49 = arith.constant 0.000000e+00 : f32
    %82 = vector.broadcast %cst_49 : f32 to vector<4x16x8xf32>
    %83 = arith.maximumf %81, %82 : vector<4x16x8xf32>
    %84 = tpu.concatenate %56, %83 in 2 : vector<4x16x80xf32>, vector<4x16x8xf32> -> vector<4x16x88xf32>
    %cst_50 = arith.constant 0.000000e+00 : f32
    %85 = vector.broadcast %cst_50 : f32 to vector<4x1x88xf32>
    %86 = tpu.concatenate %85, %84, %85 in 1 : vector<4x1x88xf32>, vector<4x16x88xf32>, vector<4x1x88xf32> -> vector<4x18x88xf32>
    %cst_51 = arith.constant 0.000000e+00 : f32
    %87 = vector.broadcast %cst_51 : f32 to vector<64x64xf32>
    %c0_52 = arith.constant 0 : index
    %c0_53 = arith.constant 0 : index
    %88 = vector.load %arg9[%c0_52, %c0_53] : memref<1x64xf32, #tpu.memory_space<vmem>>, vector<1x64xf32>
    %89 = vector.broadcast %88 : vector<1x64xf32> to vector<64x64xf32>
    %90 = arith.addf %87, %89 : vector<64x64xf32>
    %91 = vector.extract_strided_slice %86 {offsets = [0, 0, 0], sizes = [4, 16, 88], strides = [1, 1, 1]} : vector<4x18x88xf32> to vector<4x16x88xf32>
    %92 = vector.shape_cast %91 : vector<4x16x88xf32> to vector<64x88xf32>
    %c0_54 = arith.constant 0 : index
    %c0_55 = arith.constant 0 : index
    %c0_56 = arith.constant 0 : index
    %93 = vector.load %arg8[%c0_54, %c0_55, %c0_56] : memref<3x88x64xf32, #tpu.memory_space<vmem>>, vector<1x88x64xf32>
    %94 = vector.shape_cast %93 : vector<1x88x64xf32> to vector<88x64xf32>
    %cst_57 = arith.constant dense<0.000000e+00> : vector<64x64xf32>
    %95 = tpu.matmul %92, %94, %cst_57 {dimension_numbers = #tpu.dot_dimension_numbers<[1], [0], [0], [1], [0, 0, 1, 1], [], []>} : vector<64x88xf32>, vector<88x64xf32>, vector<64x64xf32> -> vector<64x64xf32>
    %96 = arith.addf %90, %95 : vector<64x64xf32>
    %97 = vector.extract_strided_slice %86 {offsets = [0, 1, 0], sizes = [4, 16, 88], strides = [1, 1, 1]} : vector<4x18x88xf32> to vector<4x16x88xf32>
    %98 = vector.shape_cast %97 : vector<4x16x88xf32> to vector<64x88xf32>
    %c1_58 = arith.constant 1 : index
    %c0_59 = arith.constant 0 : index
    %c0_60 = arith.constant 0 : index
    %99 = vector.load %arg8[%c1_58, %c0_59, %c0_60] : memref<3x88x64xf32, #tpu.memory_space<vmem>>, vector<1x88x64xf32>
    %100 = vector.shape_cast %99 : vector<1x88x64xf32> to vector<88x64xf32>
    %cst_61 = arith.constant dense<0.000000e+00> : vector<64x64xf32>
    %101 = tpu.matmul %98, %100, %cst_61 {dimension_numbers = #tpu.dot_dimension_numbers<[1], [0], [0], [1], [0, 0, 1, 1], [], []>} : vector<64x88xf32>, vector<88x64xf32>, vector<64x64xf32> -> vector<64x64xf32>
    %102 = arith.addf %96, %101 : vector<64x64xf32>
    %103 = vector.extract_strided_slice %86 {offsets = [0, 2, 0], sizes = [4, 16, 88], strides = [1, 1, 1]} : vector<4x18x88xf32> to vector<4x16x88xf32>
    %104 = vector.shape_cast %103 : vector<4x16x88xf32> to vector<64x88xf32>
    %c2_62 = arith.constant 2 : index
    %c0_63 = arith.constant 0 : index
    %c0_64 = arith.constant 0 : index
    %105 = vector.load %arg8[%c2_62, %c0_63, %c0_64] : memref<3x88x64xf32, #tpu.memory_space<vmem>>, vector<1x88x64xf32>
    %106 = vector.shape_cast %105 : vector<1x88x64xf32> to vector<88x64xf32>
    %cst_65 = arith.constant dense<0.000000e+00> : vector<64x64xf32>
    %107 = tpu.matmul %104, %106, %cst_65 {dimension_numbers = #tpu.dot_dimension_numbers<[1], [0], [0], [1], [0, 0, 1, 1], [], []>} : vector<64x88xf32>, vector<88x64xf32>, vector<64x64xf32> -> vector<64x64xf32>
    %108 = arith.addf %102, %107 : vector<64x64xf32>
    %109 = vector.shape_cast %108 : vector<64x64xf32> to vector<4x16x64xf32>
    %110 = vector.extract_strided_slice %109 {offsets = [0, 1, 0], sizes = [4, 1, 64], strides = [1, 1, 1]} : vector<4x16x64xf32> to vector<4x1x64xf32>
    %111 = vector.extract_strided_slice %109 {offsets = [0, 3, 0], sizes = [4, 1, 64], strides = [1, 1, 1]} : vector<4x16x64xf32> to vector<4x1x64xf32>
    %112 = vector.extract_strided_slice %109 {offsets = [0, 5, 0], sizes = [4, 1, 64], strides = [1, 1, 1]} : vector<4x16x64xf32> to vector<4x1x64xf32>
    %113 = vector.extract_strided_slice %109 {offsets = [0, 7, 0], sizes = [4, 1, 64], strides = [1, 1, 1]} : vector<4x16x64xf32> to vector<4x1x64xf32>
    %114 = vector.extract_strided_slice %109 {offsets = [0, 9, 0], sizes = [4, 1, 64], strides = [1, 1, 1]} : vector<4x16x64xf32> to vector<4x1x64xf32>
    %115 = vector.extract_strided_slice %109 {offsets = [0, 11, 0], sizes = [4, 1, 64], strides = [1, 1, 1]} : vector<4x16x64xf32> to vector<4x1x64xf32>
    %116 = vector.extract_strided_slice %109 {offsets = [0, 13, 0], sizes = [4, 1, 64], strides = [1, 1, 1]} : vector<4x16x64xf32> to vector<4x1x64xf32>
    %117 = tpu.concatenate %110, %111, %112, %113, %114, %115, %116 in 1 : vector<4x1x64xf32>, vector<4x1x64xf32>, vector<4x1x64xf32>, vector<4x1x64xf32>, vector<4x1x64xf32>, vector<4x1x64xf32>, vector<4x1x64xf32> -> vector<4x7x64xf32>
    %cst_66 = arith.constant dense<0.000000e+00> : vector<4x64xf32>
    %118 = vector.multi_reduction <add>, %117, %cst_66 [1] : vector<4x7x64xf32> to vector<4x64xf32>
    %119 = vector.shape_cast %118 : vector<4x64xf32> to vector<4x1x64xf32>
    %cst_67 = arith.constant 7.000000e+00 : f32
    %120 = vector.broadcast %cst_67 : f32 to vector<4x1x64xf32>
    %121 = arith.divf %119, %120 : vector<4x1x64xf32>
    %122 = vector.broadcast %121 : vector<4x1x64xf32> to vector<4x7x64xf32>
    %123 = arith.subf %117, %122 : vector<4x7x64xf32>
    %124 = arith.mulf %123, %123 : vector<4x7x64xf32>
    %cst_68 = arith.constant dense<0.000000e+00> : vector<4x64xf32>
    %125 = vector.multi_reduction <add>, %124, %cst_68 [1] : vector<4x7x64xf32> to vector<4x64xf32>
    %126 = vector.shape_cast %125 : vector<4x64xf32> to vector<4x1x64xf32>
    %cst_69 = arith.constant 7.000000e+00 : f32
    %127 = vector.broadcast %cst_69 : f32 to vector<4x1x64xf32>
    %128 = arith.divf %126, %127 : vector<4x1x64xf32>
    %129 = vector.broadcast %121 : vector<4x1x64xf32> to vector<4x7x64xf32>
    %130 = arith.subf %117, %129 : vector<4x7x64xf32>
    %cst_70 = arith.constant 9.99999974E-6 : f32
    %131 = vector.broadcast %cst_70 : f32 to vector<4x1x64xf32>
    %132 = arith.addf %128, %131 : vector<4x1x64xf32>
    %133 = math.rsqrt %132 : vector<4x1x64xf32>
    %134 = vector.broadcast %133 : vector<4x1x64xf32> to vector<4x7x64xf32>
    %135 = arith.mulf %130, %134 : vector<4x7x64xf32>
    %c0_71 = arith.constant 0 : index
    %c0_72 = arith.constant 0 : index
    %136 = vector.load %arg10[%c0_71, %c0_72] : memref<1x1xf32, #tpu.memory_space<vmem>>, vector<1x1xf32>
    %cst_73 = arith.constant 0.000000e+00 : f32
    %137 = vector.broadcast %cst_73 : f32 to vector<4x7x64xf32>
    %138 = arith.cmpf oge, %135, %137 : vector<4x7x64xf32>
    %139 = vector.shape_cast %136 : vector<1x1xf32> to vector<1x1x1xf32>
    %140 = vector.broadcast %139 : vector<1x1x1xf32> to vector<4x7x64xf32>
    %141 = arith.mulf %140, %135 : vector<4x7x64xf32>
    %142 = arith.select %138, %135, %141 : vector<4x7x64xi1>, vector<4x7x64xf32>
    %c0_74 = arith.constant 0 : index
    %c0_75 = arith.constant 0 : index
    %c0_76 = arith.constant 0 : index
    %143 = vector.load %arg11[%c0_74, %c0_75, %c0_76] : memref<4x7x64xf32, #tpu.memory_space<vmem>>, vector<4x7x64xf32>
    tpu.vector_store %arg11[%c0_74, %c0_75, %c0_76], %142 {strides = array<i32>} : memref<4x7x64xf32, #tpu.memory_space<vmem>>, vector<4x7x64xf32>,
    return
  }
  func.func @transform_0(%arg0: i32) -> (i32, i32, i32) {
    %c0_i32 = arith.constant 0 : i32
    %c0_i32_0 = arith.constant 0 : i32
    %c0_i32_1 = arith.constant 0 : i32
    return %arg0, %c0_i32, %c0_i32_0 : i32, i32, i32
  }
  func.func @transform_1(%arg0: i32) -> (i32, i32, i32) {
    %c0_i32 = arith.constant 0 : i32
    %c0_i32_0 = arith.constant 0 : i32
    %c0_i32_1 = arith.constant 0 : i32
    %c0_i32_2 = arith.constant 0 : i32
    return %c0_i32, %c0_i32_0, %c0_i32_1 : i32, i32, i32
  }
  func.func @transform_2(%arg0: i32) -> (i32, i32) {
    %c0_i32 = arith.constant 0 : i32
    %c0_i32_0 = arith.constant 0 : i32
    %c0_i32_1 = arith.constant 0 : i32
    return %c0_i32, %c0_i32_0 : i32, i32
  }
  func.func @transform_3(%arg0: i32) -> (i32, i32, i32) {
    %c0_i32 = arith.constant 0 : i32
    %c0_i32_0 = arith.constant 0 : i32
    %c0_i32_1 = arith.constant 0 : i32
    %c0_i32_2 = arith.constant 0 : i32
    return %c0_i32, %c0_i32_0, %c0_i32_1 : i32, i32, i32
  }
  func.func @transform_4(%arg0: i32) -> (i32, i32) {
    %c0_i32 = arith.constant 0 : i32
    %c0_i32_0 = arith.constant 0 : i32
    %c0_i32_1 = arith.constant 0 : i32
    return %c0_i32, %c0_i32_0 : i32, i32
  }
  func.func @transform_5(%arg0: i32) -> (i32, i32, i32) {
    %c0_i32 = arith.constant 0 : i32
    %c0_i32_0 = arith.constant 0 : i32
    %c0_i32_1 = arith.constant 0 : i32
    %c0_i32_2 = arith.constant 0 : i32
    return %c0_i32, %c0_i32_0, %c0_i32_1 : i32, i32, i32
  }
  func.func @transform_6(%arg0: i32) -> (i32, i32) {
    %c0_i32 = arith.constant 0 : i32
    %c0_i32_0 = arith.constant 0 : i32
    %c0_i32_1 = arith.constant 0 : i32
    return %c0_i32, %c0_i32_0 : i32, i32
  }
  func.func @transform_7(%arg0: i32) -> (i32, i32, i32) {
    %c0_i32 = arith.constant 0 : i32
    %c0_i32_0 = arith.constant 0 : i32
    %c0_i32_1 = arith.constant 0 : i32
    %c0_i32_2 = arith.constant 0 : i32
    return %c0_i32, %c0_i32_0, %c0_i32_1 : i32, i32, i32
  }
  func.func @transform_8(%arg0: i32) -> (i32, i32) {
    %c0_i32 = arith.constant 0 : i32
    %c0_i32_0 = arith.constant 0 : i32
    %c0_i32_1 = arith.constant 0 : i32
    return %c0_i32, %c0_i32_0 : i32, i32
  }
  func.func @transform_9(%arg0: i32) -> (i32, i32) {
    %c0_i32 = arith.constant 0 : i32
    %c0_i32_0 = arith.constant 0 : i32
    %c0_i32_1 = arith.constant 0 : i32
    return %c0_i32, %c0_i32_0 : i32, i32
  }
  func.func @transform_10(%arg0: i32) -> (i32, i32, i32) {
    %c0_i32 = arith.constant 0 : i32
    %c0_i32_0 = arith.constant 0 : i32
    %c0_i32_1 = arith.constant 0 : i32
    return %arg0, %c0_i32, %c0_i32_0 : i32, i32, i32
  }
}

</mosaic_0001>

<llo_original>
// kernel: tpu_custom_call.1
$region0: #{tpu_custom_call.1}
  #allocation0 [shape = 'u32[]', space=smem, size = 0x4, offset = 0x4, fixed_abs, tag = 'smem constant byte address 0x4 - core index']
  #allocation1 [shape = 'u32[144,128]{1,0:T(1,128)}', space=vmem, size = 0x12000, scoped, tag = 'internal scratch']
  #allocation2 [shape = 'f32[1,1]{1,0:T(1,128)S(1)}', space=vmem, size = 0x200, scoped, tag = 'scoped memory for tpu_custom_call.1']
  %s0 = inlined_call_operand.vmem [shape: f32[8,16,64], index: 0, kind: input, shape index: {}]
  %s1 = inlined_call_operand.vmem [shape: f32[3,64,8], index: 1, kind: input, shape index: {}]
  %s2 = inlined_call_operand.vmem [shape: f32[1,8], index: 2, kind: input, shape index: {}]
  %s3 = inlined_call_operand.vmem [shape: f32[3,72,8], index: 3, kind: input, shape index: {}]
  %s4 = inlined_call_operand.vmem [shape: f32[1,8], index: 4, kind: input, shape index: {}]
  %s5 = inlined_call_operand.vmem [shape: f32[3,80,8], index: 5, kind: input, shape index: {}]
  %s6 = inlined_call_operand.vmem [shape: f32[1,8], index: 6, kind: input, shape index: {}]
  %s7 = inlined_call_operand.vmem [shape: f32[3,88,64], index: 7, kind: input, shape index: {}]
  %s8 = inlined_call_operand.vmem [shape: f32[1,64], index: 8, kind: input, shape index: {}]
  %s9 = inlined_call_operand.<no memory space> [shape: f32[1,1], index: 9, kind: input, shape index: {}]
  %s10 = inlined_call_operand.vmem [shape: f32[8,7,64], index: 10, kind: output, shape index: {}]
  %s11 = sld [smem:[#allocation0]]
  $region73: #{tpu_custom_call.1} parent=0
    _
  %s13 = ssub.s32 1, %s11
  %s14 = scalar_select 0, %s13, %s11
  %v15 = vstv %s9
  %16 = vst [vmem:[#allocation2] sm:$0x1] %v15
  loop: start=0, step=1, limit=4
  $region2: #{tpu_custom_call.1} parent=0 // loop_pre_header
    _
  $region3: #{tpu_custom_call.1} parent=0 // loop_header
    %s18 = sphi 0, %s22
    %p19 = scmp.ge.s32.totalorder %s18, 4
    %s28 = sphi 0, %s30
    %s31 = sphi 0, %s28
    %s32 = sphi 0, %s31
    %s48 = sphi 0, %s32
    %s52 = sphi 0, %s52
    %s54 = sphi 0, %s52
    %s55 = sphi 0, %s54
    %s69 = sphi 0, %s55
    %s73 = sphi 0, %s73
    %s75 = sphi 0, %s73
    %s76 = sphi 0, %s75
    %s90 = sphi 0, %s76
    %s94 = sphi 0, %s94
    %s96 = sphi 0, %s94
    %s97 = sphi 0, %s96
    %s111 = sphi 0, %s97
    %s115 = sphi 0, %s115
    %s117 = sphi 0, %s115
    %s118 = sphi 0, %s117
    %s132 = sphi 0, %s118
    %s136 = sphi 0, %s136
    %s138 = sphi 0, %s136
    %s139 = sphi 0, %s138
    %s153 = sphi 0, %s139
    %s157 = sphi 0, %s157
    %s159 = sphi 0, %s157
    %s160 = sphi 0, %s159
    %s174 = sphi 0, %s160
    %s178 = sphi 0, %s178
    %s180 = sphi 0, %s178
    %s181 = sphi 0, %s180
    %s195 = sphi 0, %s181
    %s199 = sphi 0, %s199
    %s201 = sphi 0, %s199
    %s202 = sphi 0, %s201
    %s216 = sphi 0, %s202
    %s220 = sphi 0, %s220
    %s222 = sphi 0, %s220
    %s223 = sphi 0, %s222
    %s237 = sphi 0, %s223
    %s243 = sphi 0, %s245
    %s246 = sphi 0, %s243
    %s247 = sphi 0, %s246
    %s263 = sphi 0, %s247
  $region4: #{tpu_custom_call.1} parent=0 // loop_header_branch
    %21 = sbr.rel (%p19) target = $region8
  $region5: #{tpu_custom_call.1} parent=0 // loop_body
    %s23 = ssub.s32 %s18, 1
    %s24 = ssub.s32 %s18, 2
    %s25 = sadd.s32 %s18, 1
    %s26 = ssub.s32 %s18, %s25
    %p27 = scmp.eq.s32.totalorder %s26, 0
    %s29 = sadd.s32 %s28, 1
    %s30 = scalar_select %p27, %s28, %s29
    %p33 = pneg %p27
    %p34 = scmp.eq.s32.totalorder %s18, 1
    %p35 = por %p33, %p34
    %p36 = scmp.ne.s32.totalorder %s28, %s31
    %p37 = scmp.eq.s32.totalorder %s18, 0
    %p38 = por %p36, %p37
    %p39 = scmp.ne.s32.totalorder %s28, %s31
    %p40 = scmp.eq.s32.totalorder %s23, 1
    %p41 = por %p39, %p40
    %p42 = scmp.ne.s32.totalorder %s31, %s32
    %p43 = scmp.eq.s32.totalorder %s23, 0
    %p44 = por %p42, %p43
    %p45 = scmp.ne.s32.totalorder %s31, %s32
    %p46 = scmp.eq.s32.totalorder %s24, 1
    %p47 = por %p45, %p46
    %p49 = scmp.ne.s32.totalorder %s32, %s48
    %p50 = scmp.eq.s32.totalorder %s24, 0
    %p51 = por %p49, %p50
    %s53 = sadd.s32 %s52, 1
    %p56 = scmp.eq.s32.totalorder %s18, 1
    %p57 = scmp.ne.s32.totalorder %s52, %s54
    %p58 = scmp.eq.s32.totalorder %s18, 0
    %p59 = por %p57, %p58
    %p60 = scmp.ne.s32.totalorder %s52, %s54
    %p61 = scmp.eq.s32.totalorder %s23, 1
    %p62 = por %p60, %p61
    %p63 = scmp.ne.s32.totalorder %s54, %s55
    %p64 = scmp.eq.s32.totalorder %s23, 0
    %p65 = por %p63, %p64
    %p66 = scmp.ne.s32.totalorder %s54, %s55
    %p67 = scmp.eq.s32.totalorder %s24, 1
    %p68 = por %p66, %p67
    %p70 = scmp.ne.s32.totalorder %s55, %s69
    %p71 = scmp.eq.s32.totalorder %s24, 0
    %p72 = por %p70, %p71
    %s74 = sadd.s32 %s73, 1
    %p77 = scmp.eq.s32.totalorder %s18, 1
    %p78 = scmp.ne.s32.totalorder %s73, %s75
    %p79 = scmp.eq.s32.totalorder %s18, 0
    %p80 = por %p78, %p79
    %p81 = scmp.ne.s32.totalorder %s73, %s75
    %p82 = scmp.eq.s32.totalorder %s23, 1
    %p83 = por %p81, %p82
    %p84 = scmp.ne.s32.totalorder %s75, %s76
    %p85 = scmp.eq.s32.totalorder %s23, 0
    %p86 = por %p84, %p85
    %p87 = scmp.ne.s32.totalorder %s75, %s76
    %p88 = scmp.eq.s32.totalorder %s24, 1
    %p89 = por %p87, %p88
    %p91 = scmp.ne.s32.totalorder %s76, %s90
    %p92 = scmp.eq.s32.totalorder %s24, 0
    %p93 = por %p91, %p92
    %s95 = sadd.s32 %s94, 1
    %p98 = scmp.eq.s32.totalorder %s18, 1
    %p99 = scmp.ne.s32.totalorder %s94, %s96
    %p100 = scmp.eq.s32.totalorder %s18, 0
    %p101 = por %p99, %p100
    %p102 = scmp.ne.s32.totalorder %s94, %s96
    %p103 = scmp.eq.s32.totalorder %s23, 1
    %p104 = por %p102, %p103
    %p105 = scmp.ne.s32.totalorder %s96, %s97
    %p106 = scmp.eq.s32.totalorder %s23, 0
    %p107 = por %p105, %p106
    %p108 = scmp.ne.s32.totalorder %s96, %s97
    %p109 = scmp.eq.s32.totalorder %s24, 1
    %p110 = por %p108, %p109
    %p112 = scmp.ne.s32.totalorder %s97, %s111
    %p113 = scmp.eq.s32.totalorder %s24, 0
    %p114 = por %p112, %p113
    %s116 = sadd.s32 %s115, 1
    %p119 = scmp.eq.s32.totalorder %s18, 1
    %p120 = scmp.ne.s32.totalorder %s115, %s117
    %p121 = scmp.eq.s32.totalorder %s18, 0
    %p122 = por %p120, %p121
    %p123 = scmp.ne.s32.totalorder %s115, %s117
    %p124 = scmp.eq.s32.totalorder %s23, 1
    %p125 = por %p123, %p124
    %p126 = scmp.ne.s32.totalorder %s117, %s118
    %p127 = scmp.eq.s32.totalorder %s23, 0
    %p128 = por %p126, %p127
    %p129 = scmp.ne.s32.totalorder %s117, %s118
    %p130 = scmp.eq.s32.totalorder %s24, 1
    %p131 = por %p129, %p130
    %p133 = scmp.ne.s32.totalorder %s118, %s132
    %p134 = scmp.eq.s32.totalorder %s24, 0
    %p135 = por %p133, %p134
    %s137 = sadd.s32 %s136, 1
    %p140 = scmp.eq.s32.totalorder %s18, 1
    %p141 = scmp.ne.s32.totalorder %s136, %s138
    %p142 = scmp.eq.s32.totalorder %s18, 0
    %p143 = por %p141, %p142
    %p144 = scmp.ne.s32.totalorder %s136, %s138
    %p145 = scmp.eq.s32.totalorder %s23, 1
    %p146 = por %p144, %p145
    %p147 = scmp.ne.s32.totalorder %s138, %s139
    %p148 = scmp.eq.s32.totalorder %s23, 0
    %p149 = por %p147, %p148
    %p150 = scmp.ne.s32.totalorder %s138, %s139
    %p151 = scmp.eq.s32.totalorder %s24, 1
    %p152 = por %p150, %p151
    %p154 = scmp.ne.s32.totalorder %s139, %s153
    %p155 = scmp.eq.s32.totalorder %s24, 0
    %p156 = por %p154, %p155
    %s158 = sadd.s32 %s157, 1
    %p161 = scmp.eq.s32.totalorder %s18, 1
    %p162 = scmp.ne.s32.totalorder %s157, %s159
    %p163 = scmp.eq.s32.totalorder %s18, 0
    %p164 = por %p162, %p163
    %p165 = scmp.ne.s32.totalorder %s157, %s159
    %p166 = scmp.eq.s32.totalorder %s23, 1
    %p167 = por %p165, %p166
    %p168 = scmp.ne.s32.totalorder %s159, %s160
    %p169 = scmp.eq.s32.totalorder %s23, 0
    %p170 = por %p168, %p169
    %p171 = scmp.ne.s32.totalorder %s159, %s160
    %p172 = scmp.eq.s32.totalorder %s24, 1
    %p173 = por %p171, %p172
    %p175 = scmp.ne.s32.totalorder %s160, %s174
    %p176 = scmp.eq.s32.totalorder %s24, 0
    %p177 = por %p175, %p176
    %s179 = sadd.s32 %s178, 1
    %p182 = scmp.eq.s32.totalorder %s18, 1
    %p183 = scmp.ne.s32.totalorder %s178, %s180
    %p184 = scmp.eq.s32.totalorder %s18, 0
    %p185 = por %p183, %p184
    %p186 = scmp.ne.s32.totalorder %s178, %s180
    %p187 = scmp.eq.s32.totalorder %s23, 1
    %p188 = por %p186, %p187
    %p189 = scmp.ne.s32.totalorder %s180, %s181
    %p190 = scmp.eq.s32.totalorder %s23, 0
    %p191 = por %p189, %p190
    %p192 = scmp.ne.s32.totalorder %s180, %s181
    %p193 = scmp.eq.s32.totalorder %s24, 1
    %p194 = por %p192, %p193
    %p196 = scmp.ne.s32.totalorder %s181, %s195
    %p197 = scmp.eq.s32.totalorder %s24, 0
    %p198 = por %p196, %p197
    %s200 = sadd.s32 %s199, 1
    %p203 = scmp.eq.s32.totalorder %s18, 1
    %p204 = scmp.ne.s32.totalorder %s199, %s201
    %p205 = scmp.eq.s32.totalorder %s18, 0
    %p206 = por %p204, %p205
    %p207 = scmp.ne.s32.totalorder %s199, %s201
    %p208 = scmp.eq.s32.totalorder %s23, 1
    %p209 = por %p207, %p208
    %p210 = scmp.ne.s32.totalorder %s201, %s202
    %p211 = scmp.eq.s32.totalorder %s23, 0
    %p212 = por %p210, %p211
    %p213 = scmp.ne.s32.totalorder %s201, %s202
    %p214 = scmp.eq.s32.totalorder %s24, 1
    %p215 = por %p213, %p214
    %p217 = scmp.ne.s32.totalorder %s202, %s216
    %p218 = scmp.eq.s32.totalorder %s24, 0
    %p219 = por %p217, %p218
    %s221 = sadd.s32 %s220, 1
    %p224 = scmp.eq.s32.totalorder %s18, 1
    %p225 = scmp.ne.s32.totalorder %s220, %s222
    %p226 = scmp.eq.s32.totalorder %s18, 0
    %p227 = por %p225, %p226
    %p228 = scmp.ne.s32.totalorder %s220, %s222
    %p229 = scmp.eq.s32.totalorder %s23, 1
    %p230 = por %p228, %p229
    %p231 = scmp.ne.s32.totalorder %s222, %s223
    %p232 = scmp.eq.s32.totalorder %s23, 0
    %p233 = por %p231, %p232
    %p234 = scmp.ne.s32.totalorder %s222, %s223
    %p235 = scmp.eq.s32.totalorder %s24, 1
    %p236 = por %p234, %p235
    %p238 = scmp.ne.s32.totalorder %s223, %s237
    %p239 = scmp.eq.s32.totalorder %s24, 0
    %p240 = por %p238, %p239
    %s241 = ssub.s32 %s18, %s25
    %p242 = scmp.eq.s32.totalorder %s241, 0
    %s244 = sadd.s32 %s243, 1
    %s245 = scalar_select %p242, %s243, %s244
    %p248 = pneg %p242
    %p249 = scmp.eq.s32.totalorder %s18, 1
    %p250 = por %p248, %p249
    %p251 = scmp.ne.s32.totalorder %s243, %s246
    %p252 = scmp.eq.s32.totalorder %s18, 0
    %p253 = por %p251, %p252
    %p254 = scmp.ne.s32.totalorder %s243, %s246
    %p255 = scmp.eq.s32.totalorder %s23, 1
    %p256 = por %p254, %p255
    %p257 = scmp.ne.s32.totalorder %s246, %s247
    %p258 = scmp.eq.s32.totalorder %s23, 0
    %p259 = por %p257, %p258
    %p260 = scmp.ne.s32.totalorder %s246, %s247
    %p261 = scmp.eq.s32.totalorder %s24, 1
    %p262 = por %p260, %p261
    %p264 = scmp.ne.s32.totalorder %s247, %s263
    %p265 = scmp.eq.s32.totalorder %s24, 0
    %p266 = por %p264, %p265
    %p267 = scmp.le.s32.totalorder 1, %s18
    %p268 = scmp.lt.s32.totalorder %s18, 3
    %p269 = pnand %p267, %p268
    %p270 = pneg %p269
    // Predicated region
    $region9: #{tpu_custom_call.1} parent=5 // pred_check
      _
    $region10: #{tpu_custom_call.1} parent=5 // pred_check_branch
      %272 = sbr.rel (%p269) target = $region12
    $region11: #{tpu_custom_call.1} parent=5 // pred_region
      %s273 = ssub.s32 %s18, 1
      // Predicated region
      $region13: #{tpu_custom_call.1} parent=11 // pred_check
        %p274 = pneg %p65
      $region14: #{tpu_custom_call.1} parent=11 // pred_check_branch
        %276 = sbr.rel (%p274) target = $region16
      $region15: #{tpu_custom_call.1} parent=11 // pred_region
        _
      $region16: #{tpu_custom_call.1} parent=11 // pred_fallthru
        _
      // Predicated region
      $region17: #{tpu_custom_call.1} parent=11 // pred_check
        %p277 = pneg %p86
      $region18: #{tpu_custom_call.1} parent=11 // pred_check_branch
        %279 = sbr.rel (%p277) target = $region20
      $region19: #{tpu_custom_call.1} parent=11 // pred_region
        _
      $region20: #{tpu_custom_call.1} parent=11 // pred_fallthru
        _
      // Predicated region
      $region21: #{tpu_custom_call.1} parent=11 // pred_check
        %p280 = pneg %p107
      $region22: #{tpu_custom_call.1} parent=11 // pred_check_branch
        %282 = sbr.rel (%p280) target = $region24
      $region23: #{tpu_custom_call.1} parent=11 // pred_region
        _
      $region24: #{tpu_custom_call.1} parent=11 // pred_fallthru
        _
      // Predicated region
      $region25: #{tpu_custom_call.1} parent=11 // pred_check
        %p283 = pneg %p128
      $region26: #{tpu_custom_call.1} parent=11 // pred_check_branch
        %285 = sbr.rel (%p283) target = $region28
      $region27: #{tpu_custom_call.1} parent=11 // pred_region
        _
      $region28: #{tpu_custom_call.1} parent=11 // pred_fallthru
        _
      // Predicated region
      $region29: #{tpu_custom_call.1} parent=11 // pred_check
        %p286 = pneg %p149
      $region30: #{tpu_custom_call.1} parent=11 // pred_check_branch
        %288 = sbr.rel (%p286) target = $region32
      $region31: #{tpu_custom_call.1} parent=11 // pred_region
        _
      $region32: #{tpu_custom_call.1} parent=11 // pred_fallthru
        _
      // Predicated region
      $region33: #{tpu_custom_call.1} parent=11 // pred_check
        %p289 = pneg %p170
      $region34: #{tpu_custom_call.1} parent=11 // pred_check_branch
        %291 = sbr.rel (%p289) target = $region36
      $region35: #{tpu_custom_call.1} parent=11 // pred_region
        _
      $region36: #{tpu_custom_call.1} parent=11 // pred_fallthru
        _
      // Predicated region
      $region37: #{tpu_custom_call.1} parent=11 // pred_check
        %p292 = pneg %p191
      $region38: #{tpu_custom_call.1} parent=11 // pred_check_branch
        %294 = sbr.rel (%p292) target = $region40
      $region39: #{tpu_custom_call.1} parent=11 // pred_region
        _
      $region40: #{tpu_custom_call.1} parent=11 // pred_fallthru
        _
      // Predicated region
      $region41: #{tpu_custom_call.1} parent=11 // pred_check
        %p295 = pneg %p212
      $region42: #{tpu_custom_call.1} parent=11 // pred_check_branch
        %297 = sbr.rel (%p295) target = $region44
      $region43: #{tpu_custom_call.1} parent=11 // pred_region
        _
      $region44: #{tpu_custom_call.1} parent=11 // pred_fallthru
        _
      // Predicated region
      $region45: #{tpu_custom_call.1} parent=11 // pred_check
        %p298 = pneg %p233
      $region46: #{tpu_custom_call.1} parent=11 // pred_check_branch
        %300 = sbr.rel (%p298) target = $region48
      $region47: #{tpu_custom_call.1} parent=11 // pred_region
        _
      $region48: #{tpu_custom_call.1} parent=11 // pred_fallthru
        _
    $region12: #{tpu_custom_call.1} parent=5 // pred_fallthru
      _
    %p301 = scmp.lt.s32.totalorder %s18, 2
    // Predicated region
    $region49: #{tpu_custom_call.1} parent=5 // pred_check
      %p302 = pneg %p301
    $region50: #{tpu_custom_call.1} parent=5 // pred_check_branch
      %304 = sbr.rel (%p302) target = $region52
    $region51: #{tpu_custom_call.1} parent=5 // pred_region
      // Predicated region
      $region53: #{tpu_custom_call.1} parent=51 // pred_check
        %p305 = pneg %p38
      $region54: #{tpu_custom_call.1} parent=51 // pred_check_branch
        %307 = sbr.rel (%p305) target = $region56
      $region55: #{tpu_custom_call.1} parent=51 // pred_region
        %s308 = smul.u32 4, %s18
        %p309 = scmp.lt.s32.totalorder %s308, 7
        %s310 = scalar_select %p309, %s308, 7
        %s311 = smul.addr %s310, 2
        %s312 = smul.addr %s311, 8
        %s313 = scalar_lea.vmem %s0, %s312
        %s314 = smul.u32 4, %s18
      $region56: #{tpu_custom_call.1} parent=51 // pred_fallthru
        _
    $region52: #{tpu_custom_call.1} parent=5 // pred_fallthru
      _
    %p315 = scmp.le.s32.totalorder 1, %s18
    %p316 = scmp.lt.s32.totalorder %s18, 3
    %p317 = pnand %p315, %p316
    %p318 = pneg %p317
    // Predicated region
    $region57: #{tpu_custom_call.1} parent=5 // pred_check
      _
    $region58: #{tpu_custom_call.1} parent=5 // pred_check_branch
      %320 = sbr.rel (%p317) target = $region60
    $region59: #{tpu_custom_call.1} parent=5 // pred_region
      %s321 = ssub.s32 %s18, 1
      %s322 = smul.u32 4, %s23
      %p323 = scmp.lt.s32.totalorder %s322, 7
      %s324 = scalar_select %p323, %s322, 7
      %s325 = smul.addr %s324, 2
      %s326 = smul.addr %s325, 8
      %s327 = scalar_lea.vmem %s0, %s326
      %p328 = pneg %p44
      %p329 = pneg %p41
      %p330 = pneg %p65
      %p331 = pneg %p62
      %p332 = pneg %p86
      %p333 = pneg %p83
      %p334 = pneg %p107
      %p335 = pneg %p104
      %p336 = pneg %p128
      %p337 = pneg %p125
      %p338 = pneg %p149
      %p339 = pneg %p146
      %p340 = pneg %p170
      %p341 = pneg %p167
      %p342 = pneg %p191
      %p343 = pneg %p188
      %p344 = pneg %p212
      %p345 = pneg %p209
      %p346 = pneg %p233
      %p347 = pneg %p230
      %p348 = pneg %p259
      %p349 = pneg %p256
      %s350 = smul.u32 4, %s23
      %p351 = scmp.lt.s32.totalorder %s350, 7
      %s352 = scalar_select %p351, %s350, 7
      %s353 = smul.addr %s352, 8
      %s354 = scalar_lea.vmem %s10, %s353
      %s355 = smul.u32 4, %s23
      %p356 = scmp.lt.s32.totalorder %s355, 7
      %s357 = scalar_select %p356, %s355, 7
      %s358 = smul.addr %s357, 2
      %s359 = smul.addr %s358, 8
      %s360 = scalar_lea.vmem %s0, %s359
      %s361 = smul.u32 4, %s23
      %s362 = smul.u32 4, %s23
      %p363 = scmp.lt.s32.totalorder %s362, 7
      %s364 = scalar_select %p363, %s362, 7
      %s365 = smul.addr %s364, 8
      %s366 = scalar_lea.vmem %s10, %s365
      %s367 = smul.u32 4, %s23
      %v368 = vld [vmem:[%s360] sm:$0xff]
      %v369 = vld [vmem:[%s360 + $0x8] sm:$0xff]
      %v370 = vld [vmem:[%s360 + $0x10] sm:$0xff]
      %v371 = vld [vmem:[%s360 + $0x18] sm:$0xff]
      %v372 = vld [vmem:[%s360 + $0x20] sm:$0xff]
      %v373 = vld [vmem:[%s360 + $0x28] sm:$0xff]
      %v374 = vld [vmem:[%s360 + $0x30] sm:$0xff]
      %v375 = vld [vmem:[%s360 + $0x38] sm:$0xff]
      %vm384 = vcmask 1040384
      %v385 = vrot.slane %v368, 7
      %v386 = vrot.slane %v369, 7
      %v387 = vsel %vm384, %v385, %v386
      %v388 = vrot.slane %v370, 7
      %v389 = vrot.slane %v371, 7
      %v390 = vsel %vm384, %v388, %v389
      %v391 = vrot.slane %v372, 7
      %v392 = vrot.slane %v373, 7
      %v393 = vsel %vm384, %v391, %v392
      %v394 = vrot.slane %v374, 7
      %v395 = vrot.slane %v375, 7
      %v396 = vsel %vm384, %v394, %v395
      %v405 = vsel %vm384, 0.0, %v385
      %v406 = vsel %vm384, 0.0, %v388
      %v407 = vsel %vm384, 0.0, %v391
      %v408 = vsel %vm384, 0.0, %v394
      %v409 = vsel %vm384, %v386, 0.0
      %v410 = vsel %vm384, %v389, 0.0
      %v411 = vsel %vm384, %v392, 0.0
      %v412 = vsel %vm384, %v395, 0.0
      %v413 = vld [vmem:[%s2] sm:$0x1]
      %v415 = vlaneseq
      %v416 = vshrl.u32 %v415, 7
      %v417 = vsub.s32 0, %v416
      %v418 = vrot.slane %v413, %v417
      %v420 = vadd.f32 %v418, 0.0
      %v421 = vld [vmem:[%s1] sm:$0xff]
      %v422 = vld [vmem:[%s1 + $0x8] sm:$0xff]
      %v423 = vld [vmem:[%s1 + $0x10] sm:$0xff]
      %v424 = vld [vmem:[%s1 + $0x18] sm:$0xff]
      %v425 = vld [vmem:[%s1 + $0x20] sm:$0xff]
      %v426 = vld [vmem:[%s1 + $0x28] sm:$0xff]
      %v427 = vld [vmem:[%s1 + $0x30] sm:$0xff]
      %v428 = vld [vmem:[%s1 + $0x38] sm:$0xff]
      %vm429 = vcmask 523264
      %v431 = vsel %vm429, %v405, 0
      %v433 = vsel %vm429, %v387, 0
      %v436 = vsel %vm429, %v406, 0
      %v438 = vsel %vm429, %v390, 0
      %v441 = vsel %vm429, %v407, 0
      %v443 = vsel %vm429, %v393, 0
      %v446 = vsel %vm429, %v408, 0
      %v448 = vsel %vm429, %v396, 0
      %450 = vmatprep.subr.mxu0 0.0
      %451 = vmatpush1.msra.mxu0 %v421
      %452 = vmatprep.subr.mxu0 0.0
      %453 = vmatpush1.msra.mxu0 %v422
      %454 = vmatprep.subr.mxu0 0.0
      %455 = vmatpush1.msra.mxu0 %v423
      %456 = vmatprep.subr.mxu0 0.0
      %457 = vmatpush1.msra.mxu0 %v424
      %458 = vmatprep.subr.mxu0 0.0
      %459 = vmatpush1.msra.mxu0 %v425
      %460 = vmatprep.subr.mxu0 0.0
      %461 = vmatpush1.msra.mxu0 %v426
      %462 = vmatprep.subr.mxu0 0.0
      %463 = vmatpush1.msra.mxu0 %v427
      %464 = vmatprep.subr.mxu0 0.0
      %465 = vmatpush1.msra.mxu0 %v428
      %466 = vmatprep.subr.mxu0 0.0
      %467 = vmatpush1.msra.mxu0 0.0
      %468 = vmatprep.subr.mxu0 0.0
      %469 = vmatpush1.msra.mxu0 0.0
      %470 = vmatprep.subr.mxu0 0.0
      %471 = vmatpush1.msra.mxu0 0.0
      %472 = vmatprep.subr.mxu0 0.0
      %473 = vmatpush1.msra.mxu0 0.0
      %474 = vmatprep.subr.mxu0 0.0
      %475 = vmatpush1.msra.mxu0 0.0
      %476 = vmatprep.subr.mxu0 0.0
      %477 = vmatpush1.msra.mxu0 0.0
      %478 = vmatprep.subr.mxu0 0.0
      %479 = vmatpush1.msra.mxu0 0.0
      %480 = vmatprep.subr.mxu0 0.0
      %481 = vmatpush1.msra.mxu0 0.0
      %482 = vmatprep.subr.mxu0 0.0
      %483 = vmatpush1.msra.mxu0 0.0
      %484 = vmatprep.subr.mxu0 0.0
      %485 = vmatpush1.msra.mxu0 0.0
      %486 = vmatprep.subr.mxu0 0.0
      %487 = vmatpush1.msra.mxu0 0.0
      %488 = vmatprep.subr.mxu0 0.0
      %489 = vmatpush1.msra.mxu0 0.0
      %490 = vmatprep.subr.mxu0 0.0
      %491 = vmatpush1.msra.mxu0 0.0
      %492 = vmatprep.subr.mxu0 0.0
      %493 = vmatpush1.msra.mxu0 0.0
      %494 = vmatprep.subr.mxu0 0.0
      %495 = vmatpush1.msra.mxu0 0.0
      %496 = vmatprep.subr.mxu0 0.0
      %497 = vmatpush1.msra.mxu0 0.0
      %498 = vmatprep.subr.mxu0 0.0
      %499 = vmatpush1.msra.mxu0 0.0
      %500 = vmatprep.subr.mxu0 0.0
      %501 = vmatpush1.msra.mxu0 0.0
      %502 = vmatprep.subr.mxu0 0.0
      %503 = vmatpush1.msra.mxu0 0.0
      %504 = vmatprep.subr.mxu0 0.0
      %505 = vmatpush1.msra.mxu0 0.0
      %506 = vmatprep.subr.mxu0 0.0
      %507 = vmatpush1.msra.mxu0 0.0
      %508 = vmatprep.subr.mxu0 0.0
      %509 = vmatpush1.msra.mxu0 0.0
      %510 = vmatprep.subr.mxu0 0.0
      %511 = vmatpush1.msra.mxu0 0.0
      %512 = vmatprep.subr.mxu0 0.0
      %513 = vmatpush1.msra.mxu0 0.0
      %514 = vmatprep.mubr.f32.mxu0 0.0
      %515 = vmatmul.mubr.f32.gmra.mrb[0].mxu0 %v431
      %v516 = vpop.f32.mrb[0].mxu0
      %v517 = vadd.f32 0.0, %v516
      %v518 = vpop.f32.mrb[0].mxu0
      %519 = vmatprep.mubr.f32.mxu0 0.0
      %520 = vmatmul.mubr.f32.gmra.mrb[0].mxu0 %v433
      %v521 = vpop.f32.mrb[0].mxu0
      %v522 = vadd.f32 0.0, %v521
      %v523 = vpop.f32.mrb[0].mxu0
      %524 = vmatprep.mubr.f32.mxu0 0.0
      %525 = vmatmul.mubr.f32.gmra.mrb[0].mxu0 %v436
      %v526 = vpop.f32.mrb[0].mxu0
      %v527 = vadd.f32 0.0, %v526
      %v528 = vpop.f32.mrb[0].mxu0
      %529 = vmatprep.mubr.f32.mxu0 0.0
      %530 = vmatmul.mubr.f32.gmra.mrb[0].mxu0 %v438
      %v531 = vpop.f32.mrb[0].mxu0
      %v532 = vadd.f32 0.0, %v531
      %v533 = vpop.f32.mrb[0].mxu0
      %534 = vmatprep.mubr.f32.mxu0 0.0
      %535 = vmatmul.mubr.f32.gmra.mrb[0].mxu0 %v441
      %v536 = vpop.f32.mrb[0].mxu0
      %v537 = vadd.f32 0.0, %v536
      %v538 = vpop.f32.mrb[0].mxu0
      %539 = vmatprep.mubr.f32.mxu0 0.0
      %540 = vmatmul.mubr.f32.gmra.mrb[0].mxu0 %v443
      %v541 = vpop.f32.mrb[0].mxu0
      %v542 = vadd.f32 0.0, %v541
      %v543 = vpop.f32.mrb[0].mxu0
      %544 = vmatprep.mubr.f32.mxu0 0.0
      %545 = vmatmul.mubr.f32.gmra.mrb[0].mxu0 %v446
      %v546 = vpop.f32.mrb[0].mxu0
      %v547 = vadd.f32 0.0, %v546
      %v548 = vpop.f32.mrb[0].mxu0
      %549 = vmatprep.mubr.f32.mxu0 0.0
      %550 = vmatmul.mubr.f32.gmra.mrb[0].mxu0 %v448
      %v551 = vpop.f32.mrb[0].mxu0
      %v552 = vadd.f32 0.0, %v551
      %v553 = vpop.f32.mrb[0].mxu0
      %554 = vdwg.mxu0
      %v555 = vadd.f32 %v420, %v517
      %v556 = vadd.f32 %v420, %v522
      %v557 = vadd.f32 %v420, %v527
      %v558 = vadd.f32 %v420, %v532
      %v559 = vadd.f32 %v420, %v537
      %v560 = vadd.f32 %v420, %v542
      %v561 = vadd.f32 %v420, %v547
      %v562 = vadd.f32 %v420, %v552
      %vm567 = vcmask 1046528
      %v568 = vrot.slane %v405, 1
      %v569 = vrot.slane %v387, 1
      %v570 = vsel %vm567, %v568, %v569
      %v571 = vrot.slane %v409, 1
      %v572 = vsel %vm567, %v569, %v571
      %v573 = vrot.slane %v406, 1
      %v574 = vrot.slane %v390, 1
      %v575 = vsel %vm567, %v573, %v574
      %v576 = vrot.slane %v410, 1
      %v577 = vsel %vm567, %v574, %v576
      %v578 = vrot.slane %v407, 1
      %v579 = vrot.slane %v393, 1
      %v580 = vsel %vm567, %v578, %v579
      %v581 = vrot.slane %v411, 1
      %v582 = vsel %vm567, %v579, %v581
      %v583 = vrot.slane %v408, 1
      %v584 = vrot.slane %v396, 1
      %v585 = vsel %vm567, %v583, %v584
      %v586 = vrot.slane %v412, 1
      %v587 = vsel %vm567, %v584, %v586
      %s588 = scalar_lea.vmem %s1, 64
      %v589 = vld [vmem:[%s588] sm:$0xff]
      %v590 = vld [vmem:[%s588 + $0x8] sm:$0xff]
      %v591 = vld [vmem:[%s588 + $0x10] sm:$0xff]
      %v592 = vld [vmem:[%s588 + $0x18] sm:$0xff]
      %v593 = vld [vmem:[%s588 + $0x20] sm:$0xff]
      %v594 = vld [vmem:[%s588 + $0x28] sm:$0xff]
      %v595 = vld [vmem:[%s588 + $0x30] sm:$0xff]
      %v596 = vld [vmem:[%s588 + $0x38] sm:$0xff]
      %v597 = vsel %vm429, %v570, 0
      %v599 = vsel %vm429, %v572, 0
      %v601 = vsel %vm429, %v575, 0
      %v603 = vsel %vm429, %v577, 0
      %v605 = vsel %vm429, %v580, 0
      %v607 = vsel %vm429, %v582, 0
      %v609 = vsel %vm429, %v585, 0
      %v611 = vsel %vm429, %v587, 0
      %613 = vmatprep.subr.mxu0 0.0
      %614 = vmatpush1.msra.mxu0 %v589
      %615 = vmatprep.subr.mxu0 0.0
      %616 = vmatpush1.msra.mxu0 %v590
      %617 = vmatprep.subr.mxu0 0.0
      %618 = vmatpush1.msra.mxu0 %v591
      %619 = vmatprep.subr.mxu0 0.0
      %620 = vmatpush1.msra.mxu0 %v592
      %621 = vmatprep.subr.mxu0 0.0
      %622 = vmatpush1.msra.mxu0 %v593
      %623 = vmatprep.subr.mxu0 0.0
      %624 = vmatpush1.msra.mxu0 %v594
      %625 = vmatprep.subr.mxu0 0.0
      %626 = vmatpush1.msra.mxu0 %v595
      %627 = vmatprep.subr.mxu0 0.0
      %628 = vmatpush1.msra.mxu0 %v596
      %629 = vmatprep.subr.mxu0 0.0
      %630 = vmatpush1.msra.mxu0 0.0
      %631 = vmatprep.subr.mxu0 0.0
      %632 = vmatpush1.msra.mxu0 0.0
      %633 = vmatprep.subr.mxu0 0.0
      %634 = vmatpush1.msra.mxu0 0.0
      %635 = vmatprep.subr.mxu0 0.0
      %636 = vmatpush1.msra.mxu0 0.0
      %637 = vmatprep.subr.mxu0 0.0
      %638 = vmatpush1.msra.mxu0 0.0
      %639 = vmatprep.subr.mxu0 0.0
      %640 = vmatpush1.msra.mxu0 0.0
      %641 = vmatprep.subr.mxu0 0.0
      %642 = vmatpush1.msra.mxu0 0.0
      %643 = vmatprep.subr.mxu0 0.0
      %644 = vmatpush1.msra.mxu0 0.0
      %645 = vmatprep.subr.mxu0 0.0
      %646 = vmatpush1.msra.mxu0 0.0
      %647 = vmatprep.subr.mxu0 0.0
      %648 = vmatpush1.msra.mxu0 0.0
      %649 = vmatprep.subr.mxu0 0.0
      %650 = vmatpush1.msra.mxu0 0.0
      %651 = vmatprep.subr.mxu0 0.0
      %652 = vmatpush1.msra.mxu0 0.0
      %653 = vmatprep.subr.mxu0 0.0
      %654 = vmatpush1.msra.mxu0 0.0
      %655 = vmatprep.subr.mxu0 0.0
      %656 = vmatpush1.msra.mxu0 0.0
      %657 = vmatprep.subr.mxu0 0.0
      %658 = vmatpush1.msra.mxu0 0.0
      %659 = vmatprep.subr.mxu0 0.0
      %660 = vmatpush1.msra.mxu0 0.0
      %661 = vmatprep.subr.mxu0 0.0
      %662 = vmatpush1.msra.mxu0 0.0
      %663 = vmatprep.subr.mxu0 0.0
      %664 = vmatpush1.msra.mxu0 0.0
      %665 = vmatprep.subr.mxu0 0.0
      %666 = vmatpush1.msra.mxu0 0.0
      %667 = vmatprep.subr.mxu0 0.0
      %668 = vmatpush1.msra.mxu0 0.0
      %669 = vmatprep.subr.mxu0 0.0
      %670 = vmatpush1.msra.mxu0 0.0
      %671 = vmatprep.subr.mxu0 0.0
      %672 = vmatpush1.msra.mxu0 0.0
      %673 = vmatprep.subr.mxu0 0.0
      %674 = vmatpush1.msra.mxu0 0.0
      %675 = vmatprep.subr.mxu0 0.0
      %676 = vmatpush1.msra.mxu0 0.0
      %677 = vmatprep.mubr.f32.mxu0 0.0
      %678 = vmatmul.mubr.f32.gmra.mrb[0].mxu0 %v597
      %v679 = vpop.f32.mrb[0].mxu0
      %v680 = vadd.f32 0.0, %v679
      %v681 = vpop.f32.mrb[0].mxu0
      %682 = vmatprep.mubr.f32.mxu0 0.0
      %683 = vmatmul.mubr.f32.gmra.mrb[0].mxu0 %v599
      %v684 = vpop.f32.mrb[0].mxu0
      %v685 = vadd.f32 0.0, %v684
      %v686 = vpop.f32.mrb[0].mxu0
      %687 = vmatprep.mubr.f32.mxu0 0.0
      %688 = vmatmul.mubr.f32.gmra.mrb[0].mxu0 %v601
      %v689 = vpop.f32.mrb[0].mxu0
      %v690 = vadd.f32 0.0, %v689
      %v691 = vpop.f32.mrb[0].mxu0
      %692 = vmatprep.mubr.f32.mxu0 0.0
      %693 = vmatmul.mubr.f32.gmra.mrb[0].mxu0 %v603
      %v694 = vpop.f32.mrb[0].mxu0
      %v695 = vadd.f32 0.0, %v694
      %v696 = vpop.f32.mrb[0].mxu0
      %697 = vmatprep.mubr.f32.mxu0 0.0
      %698 = vmatmul.mubr.f32.gmra.mrb[0].mxu0 %v605
      %v699 = vpop.f32.mrb[0].mxu0
      %v700 = vadd.f32 0.0, %v699
      %v701 = vpop.f32.mrb[0].mxu0
      %702 = vmatprep.mubr.f32.mxu0 0.0
      %703 = vmatmul.mubr.f32.gmra.mrb[0].mxu0 %v607
      %v704 = vpop.f32.mrb[0].mxu0
      %v705 = vadd.f32 0.0, %v704
      %v706 = vpop.f32.mrb[0].mxu0
      %707 = vmatprep.mubr.f32.mxu0 0.0
      %708 = vmatmul.mubr.f32.gmra.mrb[0].mxu0 %v609
      %v709 = vpop.f32.mrb[0].mxu0
      %v710 = vadd.f32 0.0, %v709
      %v711 = vpop.f32.mrb[0].mxu0
      %712 = vmatprep.mubr.f32.mxu0 0.0
      %713 = vmatmul.mubr.f32.gmra.mrb[0].mxu0 %v611
      %v714 = vpop.f32.mrb[0].mxu0
      %v715 = vadd.f32 0.0, %v714
      %v716 = vpop.f32.mrb[0].mxu0
      %717 = vdwg.mxu0
      %v718 = vadd.f32 %v555, %v680
      %v719 = vadd.f32 %v556, %v685
      %v720 = vadd.f32 %v557, %v690
      %v721 = vadd.f32 %v558, %v695
      %v722 = vadd.f32 %v559, %v700
      %v723 = vadd.f32 %v560, %v705
      %v724 = vadd.f32 %v561, %v710
      %v725 = vadd.f32 %v562, %v715
      %vm726 = vcmask 1045504
      %v727 = vrot.slane %v405, 2
      %v728 = vrot.slane %v387, 2
      %v729 = vsel %vm726, %v727, %v728
      %v730 = vrot.slane %v409, 2
      %v731 = vsel %vm726, %v728, %v730
      %v732 = vrot.slane %v406, 2
      %v733 = vrot.slane %v390, 2
      %v734 = vsel %vm726, %v732, %v733
      %v735 = vrot.slane %v410, 2
      %v736 = vsel %vm726, %v733, %v735
      %v737 = vrot.slane %v407, 2
      %v738 = vrot.slane %v393, 2
      %v739 = vsel %vm726, %v737, %v738
      %v740 = vrot.slane %v411, 2
      %v741 = vsel %vm726, %v738, %v740
      %v742 = vrot.slane %v408, 2
      %v743 = vrot.slane %v396, 2
      %v744 = vsel %vm726, %v742, %v743
      %v745 = vrot.slane %v412, 2
      %v746 = vsel %vm726, %v743, %v745
      %s747 = scalar_lea.vmem %s1, 128
      %v748 = vld [vmem:[%s747] sm:$0xff]
      %v749 = vld [vmem:[%s747 + $0x8] sm:$0xff]
      %v750 = vld [vmem:[%s747 + $0x10] sm:$0xff]
      %v751 = vld [vmem:[%s747 + $0x18] sm:$0xff]
      %v752 = vld [vmem:[%s747 + $0x20] sm:$0xff]
      %v753 = vld [vmem:[%s747 + $0x28] sm:$0xff]
      %v754 = vld [vmem:[%s747 + $0x30] sm:$0xff]
      %v755 = vld [vmem:[%s747 + $0x38] sm:$0xff]
      %v756 = vsel %vm429, %v729, 0
      %v758 = vsel %vm429, %v731, 0
      %v760 = vsel %vm429, %v734, 0
      %v762 = vsel %vm429, %v736, 0
      %v764 = vsel %vm429, %v739, 0
      %v766 = vsel %vm429, %v741, 0
      %v768 = vsel %vm429, %v744, 0
      %v770 = vsel %vm429, %v746, 0
      %772 = vmatprep.subr.mxu0 0.0
      %773 = vmatpush1.msra.mxu0 %v748
      %774 = vmatprep.subr.mxu0 0.0
      %775 = vmatpush1.msra.mxu0 %v749
      %776 = vmatprep.subr.mxu0 0.0
      %777 = vmatpush1.msra.mxu0 %v750
      %778 = vmatprep.subr.mxu0 0.0
      %779 = vmatpush1.msra.mxu0 %v751
      %780 = vmatprep.subr.mxu0 0.0
      %781 = vmatpush1.msra.mxu0 %v752
      %782 = vmatprep.subr.mxu0 0.0
      %783 = vmatpush1.msra.mxu0 %v753
      %784 = vmatprep.subr.mxu0 0.0
      %785 = vmatpush1.msra.mxu0 %v754
      %786 = vmatprep.subr.mxu0 0.0
      %787 = vmatpush1.msra.mxu0 %v755
      %788 = vmatprep.subr.mxu0 0.0
      %789 = vmatpush1.msra.mxu0 0.0
      %790 = vmatprep.subr.mxu0 0.0
      %791 = vmatpush1.msra.mxu0 0.0
      %792 = vmatprep.subr.mxu0 0.0
      %793 = vmatpush1.msra.mxu0 0.0
      %794 = vmatprep.subr.mxu0 0.0
      %795 = vmatpush1.msra.mxu0 0.0
      %796 = vmatprep.subr.mxu0 0.0
      %797 = vmatpush1.msra.mxu0 0.0
      %798 = vmatprep.subr.mxu0 0.0
      %799 = vmatpush1.msra.mxu0 0.0
      %800 = vmatprep.subr.mxu0 0.0
      %801 = vmatpush1.msra.mxu0 0.0
      %802 = vmatprep.subr.mxu0 0.0
      %803 = vmatpush1.msra.mxu0 0.0
      %804 = vmatprep.subr.mxu0 0.0
      %805 = vmatpush1.msra.mxu0 0.0
      %806 = vmatprep.subr.mxu0 0.0
      %807 = vmatpush1.msra.mxu0 0.0
      %808 = vmatprep.subr.mxu0 0.0
      %809 = vmatpush1.msra.mxu0 0.0
      %810 = vmatprep.subr.mxu0 0.0
      %811 = vmatpush1.msra.mxu0 0.0
      %812 = vmatprep.subr.mxu0 0.0
      %813 = vmatpush1.msra.mxu0 0.0
      %814 = vmatprep.subr.mxu0 0.0
      %815 = vmatpush1.msra.mxu0 0.0
      %816 = vmatprep.subr.mxu0 0.0
      %817 = vmatpush1.msra.mxu0 0.0
      %818 = vmatprep.subr.mxu0 0.0
      %819 = vmatpush1.msra.mxu0 0.0
      %820 = vmatprep.subr.mxu0 0.0
      %821 = vmatpush1.msra.mxu0 0.0
      %822 = vmatprep.subr.mxu0 0.0
      %823 = vmatpush1.msra.mxu0 0.0
      %824 = vmatprep.subr.mxu0 0.0
      %825 = vmatpush1.msra.mxu0 0.0
      %826 = vmatprep.subr.mxu0 0.0
      %827 = vmatpush1.msra.mxu0 0.0
      %828 = vmatprep.subr.mxu0 0.0
      %829 = vmatpush1.msra.mxu0 0.0
      %830 = vmatprep.subr.mxu0 0.0
      %831 = vmatpush1.msra.mxu0 0.0
      %832 = vmatprep.subr.mxu0 0.0
      %833 = vmatpush1.msra.mxu0 0.0
      %834 = vmatprep.subr.mxu0 0.0
      %835 = vmatpush1.msra.mxu0 0.0
      %836 = vmatprep.mubr.f32.mxu0 0.0
      %837 = vmatmul.mubr.f32.gmra.mrb[0].mxu0 %v756
      %v838 = vpop.f32.mrb[0].mxu0
      %v839 = vadd.f32 0.0, %v838
      %v840 = vpop.f32.mrb[0].mxu0
      %841 = vmatprep.mubr.f32.mxu0 0.0
      %842 = vmatmul.mubr.f32.gmra.mrb[0].mxu0 %v758
      %v843 = vpop.f32.mrb[0].mxu0
      %v844 = vadd.f32 0.0, %v843
      %v845 = vpop.f32.mrb[0].mxu0
      %846 = vmatprep.mubr.f32.mxu0 0.0
      %847 = vmatmul.mubr.f32.gmra.mrb[0].mxu0 %v760
      %v848 = vpop.f32.mrb[0].mxu0
      %v849 = vadd.f32 0.0, %v848
      %v850 = vpop.f32.mrb[0].mxu0
      %851 = vmatprep.mubr.f32.mxu0 0.0
      %852 = vmatmul.mubr.f32.gmra.mrb[0].mxu0 %v762
      %v853 = vpop.f32.mrb[0].mxu0
      %v854 = vadd.f32 0.0, %v853
      %v855 = vpop.f32.mrb[0].mxu0
      %856 = vmatprep.mubr.f32.mxu0 0.0
      %857 = vmatmul.mubr.f32.gmra.mrb[0].mxu0 %v764
      %v858 = vpop.f32.mrb[0].mxu0
      %v859 = vadd.f32 0.0, %v858
      %v860 = vpop.f32.mrb[0].mxu0
      %861 = vmatprep.mubr.f32.mxu0 0.0
      %862 = vmatmul.mubr.f32.gmra.mrb[0].mxu0 %v766
      %v863 = vpop.f32.mrb[0].mxu0
      %v864 = vadd.f32 0.0, %v863
      %v865 = vpop.f32.mrb[0].mxu0
      %866 = vmatprep.mubr.f32.mxu0 0.0
      %867 = vmatmul.mubr.f32.gmra.mrb[0].mxu0 %v768
      %v868 = vpop.f32.mrb[0].mxu0
      %v869 = vadd.f32 0.0, %v868
      %v870 = vpop.f32.mrb[0].mxu0
      %871 = vmatprep.mubr.f32.mxu0 0.0
      %872 = vmatmul.mubr.f32.gmra.mrb[0].mxu0 %v770
      %v873 = vpop.f32.mrb[0].mxu0
      %v874 = vadd.f32 0.0, %v873
      %v875 = vpop.f32.mrb[0].mxu0
      %876 = vdwg.mxu0
      %v877 = vadd.f32 %v718, %v839
      %v878 = vadd.f32 %v719, %v844
      %v879 = vadd.f32 %v720, %v849
      %v880 = vadd.f32 %v721, %v854
      %v881 = vadd.f32 %v722, %v859
      %v882 = vadd.f32 %v723, %v864
      %v883 = vadd.f32 %v724, %v869
      %v884 = vadd.f32 %v725, %v874
      %v885 = vmax.f32 %v877, 0.0
      %v886 = vmax.f32 %v878, 0.0
      %v887 = vmax.f32 %v879, 0.0
      %v888 = vmax.f32 %v880, 0.0
      %v889 = vmax.f32 %v881, 0.0
      %v890 = vmax.f32 %v882, 0.0
      %v891 = vmax.f32 %v883, 0.0
      %v892 = vmax.f32 %v884, 0.0
      %901 = vrot.lane.b32.xlu0 %v885, 64
      %v902 = vpop.permute.xlu0 %901
      %903 = vrot.lane.b32.xlu0 %v886, 64
      %v904 = vpop.permute.xlu0 %903
      %905 = vrot.lane.b32.xlu0 %v887, 64
      %v906 = vpop.permute.xlu0 %905
      %907 = vrot.lane.b32.xlu0 %v888, 64
      %v908 = vpop.permute.xlu0 %907
      %909 = vrot.lane.b32.xlu0 %v889, 64
      %v910 = vpop.permute.xlu0 %909
      %911 = vrot.lane.b32.xlu0 %v890, 64
      %v912 = vpop.permute.xlu0 %911
      %913 = vrot.lane.b32.xlu0 %v891, 64
      %v914 = vpop.permute.xlu0 %913
      %915 = vrot.lane.b32.xlu0 %v892, 64
      %v916 = vpop.permute.xlu0 %915
      %v925 = vsel %vm429, %v368, %v902
      %v926 = vsel %vm429, %v369, %v904
      %v927 = vsel %vm429, %v370, %v906
      %v928 = vsel %vm429, %v371, %v908
      %v929 = vsel %vm429, %v372, %v910
      %v930 = vsel %vm429, %v373, %v912
      %v931 = vsel %vm429, %v374, %v914
      %v932 = vsel %vm429, %v375, %v916
      %v941 = vrot.slane %v925, 7
      %v942 = vrot.slane %v926, 7
      %v943 = vsel %vm384, %v941, %v942
      %v944 = vrot.slane %v927, 7
      %v945 = vrot.slane %v928, 7
      %v946 = vsel %vm384, %v944, %v945
      %v947 = vrot.slane %v929, 7
      %v948 = vrot.slane %v930, 7
      %v949 = vsel %vm384, %v947, %v948
      %v950 = vrot.slane %v931, 7
      %v951 = vrot.slane %v932, 7
      %v952 = vsel %vm384, %v950, %v951
      %v961 = vsel %vm384, 0.0, %v941
      %v962 = vsel %vm384, 0.0, %v944
      %v963 = vsel %vm384, 0.0, %v947
      %v964 = vsel %vm384, 0.0, %v950
      %v965 = vsel %vm384, %v942, 0.0
      %v966 = vsel %vm384, %v945, 0.0
      %v967 = vsel %vm384, %v948, 0.0
      %v968 = vsel %vm384, %v951, 0.0
      %v969 = vld [vmem:[%s4] sm:$0x1]
      %v971 = vlaneseq
      %v972 = vshrl.u32 %v971, 7
      %v973 = vsub.s32 0, %v972
      %v974 = vrot.slane %v969, %v973
      %v976 = vadd.f32 %v974, 0.0
      %v977 = vld [vmem:[%s3] sm:$0xff]
      %v978 = vld [vmem:[%s3 + $0x8] sm:$0xff]
      %v979 = vld [vmem:[%s3 + $0x10] sm:$0xff]
      %v980 = vld [vmem:[%s3 + $0x18] sm:$0xff]
      %v981 = vld [vmem:[%s3 + $0x20] sm:$0xff]
      %v982 = vld [vmem:[%s3 + $0x28] sm:$0xff]
      %v983 = vld [vmem:[%s3 + $0x30] sm:$0xff]
      %v984 = vld [vmem:[%s3 + $0x38] sm:$0xff]
      %v985 = vld [vmem:[%s3 + $0x40] sm:$0xff]
      %vm986 = vcmask 588800
      %v988 = vsel %vm986, %v961, 0
      %v990 = vsel %vm986, %v943, 0
      %v993 = vsel %vm986, %v962, 0
      %v995 = vsel %vm986, %v946, 0
      %v998 = vsel %vm986, %v963, 0
      %v1000 = vsel %vm986, %v949, 0
      %v1003 = vsel %vm986, %v964, 0
      %v1005 = vsel %vm986, %v952, 0
      %1007 = vmatprep.subr.mxu0 0.0
      %1008 = vmatpush1.msra.mxu0 %v977
      %1009 = vmatprep.subr.mxu0 0.0
      %1010 = vmatpush1.msra.mxu0 %v978
      %1011 = vmatprep.subr.mxu0 0.0
      %1012 = vmatpush1.msra.mxu0 %v979
      %1013 = vmatprep.subr.mxu0 0.0
      %1014 = vmatpush1.msra.mxu0 %v980
      %1015 = vmatprep.subr.mxu0 0.0
      %1016 = vmatpush1.msra.mxu0 %v981
      %1017 = vmatprep.subr.mxu0 0.0
      %1018 = vmatpush1.msra.mxu0 %v982
      %1019 = vmatprep.subr.mxu0 0.0
      %1020 = vmatpush1.msra.mxu0 %v983
      %1021 = vmatprep.subr.mxu0 0.0
      %1022 = vmatpush1.msra.mxu0 %v984
      %1023 = vmatprep.subr.mxu0 0.0
      %1024 = vmatpush1.msra.mxu0 %v985
      %1025 = vmatprep.subr.mxu0 0.0
      %1026 = vmatpush1.msra.mxu0 0.0
      %1027 = vmatprep.subr.mxu0 0.0
      %1028 = vmatpush1.msra.mxu0 0.0
      %1029 = vmatprep.subr.mxu0 0.0
      %1030 = vmatpush1.msra.mxu0 0.0
      %1031 = vmatprep.subr.mxu0 0.0
      %1032 = vmatpush1.msra.mxu0 0.0
      %1033 = vmatprep.subr.mxu0 0.0
      %1034 = vmatpush1.msra.mxu0 0.0
      %1035 = vmatprep.subr.mxu0 0.0
      %1036 = vmatpush1.msra.mxu0 0.0
      %1037 = vmatprep.subr.mxu0 0.0
      %1038 = vmatpush1.msra.mxu0 0.0
      %1039 = vmatprep.subr.mxu0 0.0
      %1040 = vmatpush1.msra.mxu0 0.0
      %1041 = vmatprep.subr.mxu0 0.0
      %1042 = vmatpush1.msra.mxu0 0.0
      %1043 = vmatprep.subr.mxu0 0.0
      %1044 = vmatpush1.msra.mxu0 0.0
      %1045 = vmatprep.subr.mxu0 0.0
      %1046 = vmatpush1.msra.mxu0 0.0
      %1047 = vmatprep.subr.mxu0 0.0
      %1048 = vmatpush1.msra.mxu0 0.0
      %1049 = vmatprep.subr.mxu0 0.0
      %1050 = vmatpush1.msra.mxu0 0.0
      %1051 = vmatprep.subr.mxu0 0.0
      %1052 = vmatpush1.msra.mxu0 0.0
      %1053 = vmatprep.subr.mxu0 0.0
      %1054 = vmatpush1.msra.mxu0 0.0
      %1055 = vmatprep.subr.mxu0 0.0
      %1056 = vmatpush1.msra.mxu0 0.0
      %1057 = vmatprep.subr.mxu0 0.0
      %1058 = vmatpush1.msra.mxu0 0.0
      %1059 = vmatprep.subr.mxu0 0.0
      %1060 = vmatpush1.msra.mxu0 0.0
      %1061 = vmatprep.subr.mxu0 0.0
      %1062 = vmatpush1.msra.mxu0 0.0
      %1063 = vmatprep.subr.mxu0 0.0
      %1064 = vmatpush1.msra.mxu0 0.0
      %1065 = vmatprep.subr.mxu0 0.0
      %1066 = vmatpush1.msra.mxu0 0.0
      %1067 = vmatprep.subr.mxu0 0.0
      %1068 = vmatpush1.msra.mxu0 0.0
      %1069 = vmatprep.subr.mxu0 0.0
      %1070 = vmatpush1.msra.mxu0 0.0
      %1071 = vmatprep.mubr.f32.mxu0 0.0
      %1072 = vmatmul.mubr.f32.gmra.mrb[0].mxu0 %v988
      %v1073 = vpop.f32.mrb[0].mxu0
      %v1074 = vadd.f32 0.0, %v1073
      %v1075 = vpop.f32.mrb[0].mxu0
      %1076 = vmatprep.mubr.f32.mxu0 0.0
      %1077 = vmatmul.mubr.f32.gmra.mrb[0].mxu0 %v990
      %v1078 = vpop.f32.mrb[0].mxu0
      %v1079 = vadd.f32 0.0, %v1078
      %v1080 = vpop.f32.mrb[0].mxu0
      %1081 = vmatprep.mubr.f32.mxu0 0.0
      %1082 = vmatmul.mubr.f32.gmra.mrb[0].mxu0 %v993
      %v1083 = vpop.f32.mrb[0].mxu0
      %v1084 = vadd.f32 0.0, %v1083
      %v1085 = vpop.f32.mrb[0].mxu0
      %1086 = vmatprep.mubr.f32.mxu0 0.0
      %1087 = vmatmul.mubr.f32.gmra.mrb[0].mxu0 %v995
      %v1088 = vpop.f32.mrb[0].mxu0
      %v1089 = vadd.f32 0.0, %v1088
      %v1090 = vpop.f32.mrb[0].mxu0
      %1091 = vmatprep.mubr.f32.mxu0 0.0
      %1092 = vmatmul.mubr.f32.gmra.mrb[0].mxu0 %v998
      %v1093 = vpop.f32.mrb[0].mxu0
      %v1094 = vadd.f32 0.0, %v1093
      %v1095 = vpop.f32.mrb[0].mxu0
      %1096 = vmatprep.mubr.f32.mxu0 0.0
      %1097 = vmatmul.mubr.f32.gmra.mrb[0].mxu0 %v1000
      %v1098 = vpop.f32.mrb[0].mxu0
      %v1099 = vadd.f32 0.0, %v1098
      %v1100 = vpop.f32.mrb[0].mxu0
      %1101 = vmatprep.mubr.f32.mxu0 0.0
      %1102 = vmatmul.mubr.f32.gmra.mrb[0].mxu0 %v1003
      %v1103 = vpop.f32.mrb[0].mxu0
      %v1104 = vadd.f32 0.0, %v1103
      %v1105 = vpop.f32.mrb[0].mxu0
      %1106 = vmatprep.mubr.f32.mxu0 0.0
      %1107 = vmatmul.mubr.f32.gmra.mrb[0].mxu0 %v1005
      %v1108 = vpop.f32.mrb[0].mxu0
      %v1109 = vadd.f32 0.0, %v1108
      %v1110 = vpop.f32.mrb[0].mxu0
      %1111 = vdwg.mxu0
      %v1112 = vadd.f32 %v976, %v1074
      %v1113 = vadd.f32 %v976, %v1079
      %v1114 = vadd.f32 %v976, %v1084
      %v1115 = vadd.f32 %v976, %v1089
      %v1116 = vadd.f32 %v976, %v1094
      %v1117 = vadd.f32 %v976, %v1099
      %v1118 = vadd.f32 %v976, %v1104
      %v1119 = vadd.f32 %v976, %v1109
      %v1124 = vrot.slane %v961, 1
      %v1125 = vrot.slane %v943, 1
      %v1126 = vsel %vm567, %v1124, %v1125
      %v1127 = vrot.slane %v965, 1
      %v1128 = vsel %vm567, %v1125, %v1127
      %v1129 = vrot.slane %v962, 1
      %v1130 = vrot.slane %v946, 1
      %v1131 = vsel %vm567, %v1129, %v1130
      %v1132 = vrot.slane %v966, 1
      %v1133 = vsel %vm567, %v1130, %v1132
      %v1134 = vrot.slane %v963, 1
      %v1135 = vrot.slane %v949, 1
      %v1136 = vsel %vm567, %v1134, %v1135
      %v1137 = vrot.slane %v967, 1
      %v1138 = vsel %vm567, %v1135, %v1137
      %v1139 = vrot.slane %v964, 1
      %v1140 = vrot.slane %v952, 1
      %v1141 = vsel %vm567, %v1139, %v1140
      %v1142 = vrot.slane %v968, 1
      %v1143 = vsel %vm567, %v1140, %v1142
      %s1144 = scalar_lea.vmem %s3, 72
      %v1145 = vld [vmem:[%s1144] sm:$0xff]
      %v1146 = vld [vmem:[%s1144 + $0x8] sm:$0xff]
      %v1147 = vld [vmem:[%s1144 + $0x10] sm:$0xff]
      %v1148 = vld [vmem:[%s1144 + $0x18] sm:$0xff]
      %v1149 = vld [vmem:[%s1144 + $0x20] sm:$0xff]
      %v1150 = vld [vmem:[%s1144 + $0x28] sm:$0xff]
      %v1151 = vld [vmem:[%s1144 + $0x30] sm:$0xff]
      %v1152 = vld [vmem:[%s1144 + $0x38] sm:$0xff]
      %v1153 = vld [vmem:[%s1144 + $0x40] sm:$0xff]
      %v1154 = vsel %vm986, %v1126, 0
      %v1156 = vsel %vm986, %v1128, 0
      %v1158 = vsel %vm986, %v1131, 0
      %v1160 = vsel %vm986, %v1133, 0
      %v1162 = vsel %vm986, %v1136, 0
      %v1164 = vsel %vm986, %v1138, 0
      %v1166 = vsel %vm986, %v1141, 0
      %v1168 = vsel %vm986, %v1143, 0
      %1170 = vmatprep.subr.mxu0 0.0
      %1171 = vmatpush1.msra.mxu0 %v1145
      %1172 = vmatprep.subr.mxu0 0.0
      %1173 = vmatpush1.msra.mxu0 %v1146
      %1174 = vmatprep.subr.mxu0 0.0
      %1175 = vmatpush1.msra.mxu0 %v1147
      %1176 = vmatprep.subr.mxu0 0.0
      %1177 = vmatpush1.msra.mxu0 %v1148
      %1178 = vmatprep.subr.mxu0 0.0
      %1179 = vmatpush1.msra.mxu0 %v1149
      %1180 = vmatprep.subr.mxu0 0.0
      %1181 = vmatpush1.msra.mxu0 %v1150
      %1182 = vmatprep.subr.mxu0 0.0
      %1183 = vmatpush1.msra.mxu0 %v1151
      %1184 = vmatprep.subr.mxu0 0.0
      %1185 = vmatpush1.msra.mxu0 %v1152
      %1186 = vmatprep.subr.mxu0 0.0
      %1187 = vmatpush1.msra.mxu0 %v1153
      %1188 = vmatprep.subr.mxu0 0.0
      %1189 = vmatpush1.msra.mxu0 0.0
      %1190 = vmatprep.subr.mxu0 0.0
      %1191 = vmatpush1.msra.mxu0 0.0
      %1192 = vmatprep.subr.mxu0 0.0
      %1193 = vmatpush1.msra.mxu0 0.0
      %1194 = vmatprep.subr.mxu0 0.0
      %1195 = vmatpush1.msra.mxu0 0.0
      %1196 = vmatprep.subr.mxu0 0.0
      %1197 = vmatpush1.msra.mxu0 0.0
      %1198 = vmatprep.subr.mxu0 0.0
      %1199 = vmatpush1.msra.mxu0 0.0
      %1200 = vmatprep.subr.mxu0 0.0
      %1201 = vmatpush1.msra.mxu0 0.0
      %1202 = vmatprep.subr.mxu0 0.0
      %1203 = vmatpush1.msra.mxu0 0.0
      %1204 = vmatprep.subr.mxu0 0.0
      %1205 = vmatpush1.msra.mxu0 0.0
      %1206 = vmatprep.subr.mxu0 0.0
      %1207 = vmatpush1.msra.mxu0 0.0
      %1208 = vmatprep.subr.mxu0 0.0
      %1209 = vmatpush1.msra.mxu0 0.0
      %1210 = vmatprep.subr.mxu0 0.0
      %1211 = vmatpush1.msra.mxu0 0.0
      %1212 = vmatprep.subr.mxu0 0.0
      %1213 = vmatpush1.msra.mxu0 0.0
      %1214 = vmatprep.subr.mxu0 0.0
      %1215 = vmatpush1.msra.mxu0 0.0
      %1216 = vmatprep.subr.mxu0 0.0
      %1217 = vmatpush1.msra.mxu0 0.0
      %1218 = vmatprep.subr.mxu0 0.0
      %1219 = vmatpush1.msra.mxu0 0.0
      %1220 = vmatprep.subr.mxu0 0.0
      %1221 = vmatpush1.msra.mxu0 0.0
      %1222 = vmatprep.subr.mxu0 0.0
      %1223 = vmatpush1.msra.mxu0 0.0
      %1224 = vmatprep.subr.mxu0 0.0
      %1225 = vmatpush1.msra.mxu0 0.0
      %1226 = vmatprep.subr.mxu0 0.0
      %1227 = vmatpush1.msra.mxu0 0.0
      %1228 = vmatprep.subr.mxu0 0.0
      %1229 = vmatpush1.msra.mxu0 0.0
      %1230 = vmatprep.subr.mxu0 0.0
      %1231 = vmatpush1.msra.mxu0 0.0
      %1232 = vmatprep.subr.mxu0 0.0
      %1233 = vmatpush1.msra.mxu0 0.0
      %1234 = vmatprep.mubr.f32.mxu0 0.0
      %1235 = vmatmul.mubr.f32.gmra.mrb[0].mxu0 %v1154
      %v1236 = vpop.f32.mrb[0].mxu0
      %v1237 = vadd.f32 0.0, %v1236
      %v1238 = vpop.f32.mrb[0].mxu0
      %1239 = vmatprep.mubr.f32.mxu0 0.0
      %1240 = vmatmul.mubr.f32.gmra.mrb[0].mxu0 %v1156
      %v1241 = vpop.f32.mrb[0].mxu0
      %v1242 = vadd.f32 0.0, %v1241
      %v1243 = vpop.f32.mrb[0].mxu0
      %1244 = vmatprep.mubr.f32.mxu0 0.0
      %1245 = vmatmul.mubr.f32.gmra.mrb[0].mxu0 %v1158
      %v1246 = vpop.f32.mrb[0].mxu0
      %v1247 = vadd.f32 0.0, %v1246
      %v1248 = vpop.f32.mrb[0].mxu0
      %1249 = vmatprep.mubr.f32.mxu0 0.0
      %1250 = vmatmul.mubr.f32.gmra.mrb[0].mxu0 %v1160
      %v1251 = vpop.f32.mrb[0].mxu0
      %v1252 = vadd.f32 0.0, %v1251
      %v1253 = vpop.f32.mrb[0].mxu0
      %1254 = vmatprep.mubr.f32.mxu0 0.0
      %1255 = vmatmul.mubr.f32.gmra.mrb[0].mxu0 %v1162
      %v1256 = vpop.f32.mrb[0].mxu0
      %v1257 = vadd.f32 0.0, %v1256
      %v1258 = vpop.f32.mrb[0].mxu0
      %1259 = vmatprep.mubr.f32.mxu0 0.0
      %1260 = vmatmul.mubr.f32.gmra.mrb[0].mxu0 %v1164
      %v1261 = vpop.f32.mrb[0].mxu0
      %v1262 = vadd.f32 0.0, %v1261
      %v1263 = vpop.f32.mrb[0].mxu0
      %1264 = vmatprep.mubr.f32.mxu0 0.0
      %1265 = vmatmul.mubr.f32.gmra.mrb[0].mxu0 %v1166
      %v1266 = vpop.f32.mrb[0].mxu0
      %v1267 = vadd.f32 0.0, %v1266
      %v1268 = vpop.f32.mrb[0].mxu0
      %1269 = vmatprep.mubr.f32.mxu0 0.0
      %1270 = vmatmul.mubr.f32.gmra.mrb[0].mxu0 %v1168
      %v1271 = vpop.f32.mrb[0].mxu0
      %v1272 = vadd.f32 0.0, %v1271
      %v1273 = vpop.f32.mrb[0].mxu0
      %1274 = vdwg.mxu0
      %v1275 = vadd.f32 %v1112, %v1237
      %v1276 = vadd.f32 %v1113, %v1242
      %v1277 = vadd.f32 %v1114, %v1247
      %v1278 = vadd.f32 %v1115, %v1252
      %v1279 = vadd.f32 %v1116, %v1257
      %v1280 = vadd.f32 %v1117, %v1262
      %v1281 = vadd.f32 %v1118, %v1267
      %v1282 = vadd.f32 %v1119, %v1272
      %v1283 = vrot.slane %v961, 2
      %v1284 = vrot.slane %v943, 2
      %v1285 = vsel %vm726, %v1283, %v1284
      %v1286 = vrot.slane %v965, 2
      %v1287 = vsel %vm726, %v1284, %v1286
      %v1288 = vrot.slane %v962, 2
      %v1289 = vrot.slane %v946, 2
      %v1290 = vsel %vm726, %v1288, %v1289
      %v1291 = vrot.slane %v966, 2
      %v1292 = vsel %vm726, %v1289, %v1291
      %v1293 = vrot.slane %v963, 2
      %v1294 = vrot.slane %v949, 2
      %v1295 = vsel %vm726, %v1293, %v1294
      %v1296 = vrot.slane %v967, 2
      %v1297 = vsel %vm726, %v1294, %v1296
      %v1298 = vrot.slane %v964, 2
      %v1299 = vrot.slane %v952, 2
      %v1300 = vsel %vm726, %v1298, %v1299
      %v1301 = vrot.slane %v968, 2
      %v1302 = vsel %vm726, %v1299, %v1301
      %s1303 = scalar_lea.vmem %s3, 144
      %v1304 = vld [vmem:[%s1303] sm:$0xff]
      %v1305 = vld [vmem:[%s1303 + $0x8] sm:$0xff]
      %v1306 = vld [vmem:[%s1303 + $0x10] sm:$0xff]
      %v1307 = vld [vmem:[%s1303 + $0x18] sm:$0xff]
      %v1308 = vld [vmem:[%s1303 + $0x20] sm:$0xff]
      %v1309 = vld [vmem:[%s1303 + $0x28] sm:$0xff]
      %v1310 = vld [vmem:[%s1303 + $0x30] sm:$0xff]
      %v1311 = vld [vmem:[%s1303 + $0x38] sm:$0xff]
      %v1312 = vld [vmem:[%s1303 + $0x40] sm:$0xff]
      %v1313 = vsel %vm986, %v1285, 0
      %v1315 = vsel %vm986, %v1287, 0
      %v1317 = vsel %vm986, %v1290, 0
      %v1319 = vsel %vm986, %v1292, 0
      %v1321 = vsel %vm986, %v1295, 0
      %v1323 = vsel %vm986, %v1297, 0
      %v1325 = vsel %vm986, %v1300, 0
      %v1327 = vsel %vm986, %v1302, 0
      %1329 = vmatprep.subr.mxu0 0.0
      %1330 = vmatpush1.msra.mxu0 %v1304
      %1331 = vmatprep.subr.mxu0 0.0
      %1332 = vmatpush1.msra.mxu0 %v1305
      %1333 = vmatprep.subr.mxu0 0.0
      %1334 = vmatpush1.msra.mxu0 %v1306
      %1335 = vmatprep.subr.mxu0 0.0
      %1336 = vmatpush1.msra.mxu0 %v1307
      %1337 = vmatprep.subr.mxu0 0.0
      %1338 = vmatpush1.msra.mxu0 %v1308
      %1339 = vmatprep.subr.mxu0 0.0
      %1340 = vmatpush1.msra.mxu0 %v1309
      %1341 = vmatprep.subr.mxu0 0.0
      %1342 = vmatpush1.msra.mxu0 %v1310
      %1343 = vmatprep.subr.mxu0 0.0
      %1344 = vmatpush1.msra.mxu0 %v1311
      %1345 = vmatprep.subr.mxu0 0.0
      %1346 = vmatpush1.msra.mxu0 %v1312
      %1347 = vmatprep.subr.mxu0 0.0
      %1348 = vmatpush1.msra.mxu0 0.0
      %1349 = vmatprep.subr.mxu0 0.0
      %1350 = vmatpush1.msra.mxu0 0.0
      %1351 = vmatprep.subr.mxu0 0.0
      %1352 = vmatpush1.msra.mxu0 0.0
      %1353 = vmatprep.subr.mxu0 0.0
      %1354 = vmatpush1.msra.mxu0 0.0
      %1355 = vmatprep.subr.mxu0 0.0
      %1356 = vmatpush1.msra.mxu0 0.0
      %1357 = vmatprep.subr.mxu0 0.0
      %1358 = vmatpush1.msra.mxu0 0.0
      %1359 = vmatprep.subr.mxu0 0.0
      %1360 = vmatpush1.msra.mxu0 0.0
      %1361 = vmatprep.subr.mxu0 0.0
      %1362 = vmatpush1.msra.mxu0 0.0
      %1363 = vmatprep.subr.mxu0 0.0
      %1364 = vmatpush1.msra.mxu0 0.0
      %1365 = vmatprep.subr.mxu0 0.0
      %1366 = vmatpush1.msra.mxu0 0.0
      %1367 = vmatprep.subr.mxu0 0.0
      %1368 = vmatpush1.msra.mxu0 0.0
      %1369 = vmatprep.subr.mxu0 0.0
      %1370 = vmatpush1.msra.mxu0 0.0
      %1371 = vmatprep.subr.mxu0 0.0
      %1372 = vmatpush1.msra.mxu0 0.0
      %1373 = vmatprep.subr.mxu0 0.0
      %1374 = vmatpush1.msra.mxu0 0.0
      %1375 = vmatprep.subr.mxu0 0.0
      %1376 = vmatpush1.msra.mxu0 0.0
      %1377 = vmatprep.subr.mxu0 0.0
      %1378 = vmatpush1.msra.mxu0 0.0
      %1379 = vmatprep.subr.mxu0 0.0
      %1380 = vmatpush1.msra.mxu0 0.0
      %1381 = vmatprep.subr.mxu0 0.0
      %1382 = vmatpush1.msra.mxu0 0.0
      %1383 = vmatprep.subr.mxu0 0.0
      %1384 = vmatpush1.msra.mxu0 0.0
      %1385 = vmatprep.subr.mxu0 0.0
      %1386 = vmatpush1.msra.mxu0 0.0
      %1387 = vmatprep.subr.mxu0 0.0
      %1388 = vmatpush1.msra.mxu0 0.0
      %1389 = vmatprep.subr.mxu0 0.0
      %1390 = vmatpush1.msra.mxu0 0.0
      %1391 = vmatprep.subr.mxu0 0.0
      %1392 = vmatpush1.msra.mxu0 0.0
      %1393 = vmatprep.mubr.f32.mxu0 0.0
      %1394 = vmatmul.mubr.f32.gmra.mrb[0].mxu0 %v1313
      %v1395 = vpop.f32.mrb[0].mxu0
      %v1396 = vadd.f32 0.0, %v1395
      %v1397 = vpop.f32.mrb[0].mxu0
      %1398 = vmatprep.mubr.f32.mxu0 0.0
      %1399 = vmatmul.mubr.f32.gmra.mrb[0].mxu0 %v1315
      %v1400 = vpop.f32.mrb[0].mxu0
      %v1401 = vadd.f32 0.0, %v1400
      %v1402 = vpop.f32.mrb[0].mxu0
      %1403 = vmatprep.mubr.f32.mxu0 0.0
      %1404 = vmatmul.mubr.f32.gmra.mrb[0].mxu0 %v1317
      %v1405 = vpop.f32.mrb[0].mxu0
      %v1406 = vadd.f32 0.0, %v1405
      %v1407 = vpop.f32.mrb[0].mxu0
      %1408 = vmatprep.mubr.f32.mxu0 0.0
      %1409 = vmatmul.mubr.f32.gmra.mrb[0].mxu0 %v1319
      %v1410 = vpop.f32.mrb[0].mxu0
      %v1411 = vadd.f32 0.0, %v1410
      %v1412 = vpop.f32.mrb[0].mxu0
      %1413 = vmatprep.mubr.f32.mxu0 0.0
      %1414 = vmatmul.mubr.f32.gmra.mrb[0].mxu0 %v1321
      %v1415 = vpop.f32.mrb[0].mxu0
      %v1416 = vadd.f32 0.0, %v1415
      %v1417 = vpop.f32.mrb[0].mxu0
      %1418 = vmatprep.mubr.f32.mxu0 0.0
      %1419 = vmatmul.mubr.f32.gmra.mrb[0].mxu0 %v1323
      %v1420 = vpop.f32.mrb[0].mxu0
      %v1421 = vadd.f32 0.0, %v1420
      %v1422 = vpop.f32.mrb[0].mxu0
      %1423 = vmatprep.mubr.f32.mxu0 0.0
      %1424 = vmatmul.mubr.f32.gmra.mrb[0].mxu0 %v1325
      %v1425 = vpop.f32.mrb[0].mxu0
      %v1426 = vadd.f32 0.0, %v1425
      %v1427 = vpop.f32.mrb[0].mxu0
      %1428 = vmatprep.mubr.f32.mxu0 0.0
      %1429 = vmatmul.mubr.f32.gmra.mrb[0].mxu0 %v1327
      %v1430 = vpop.f32.mrb[0].mxu0
      %v1431 = vadd.f32 0.0, %v1430
      %v1432 = vpop.f32.mrb[0].mxu0
      %1433 = vdwg.mxu0
      %v1434 = vadd.f32 %v1275, %v1396
      %v1435 = vadd.f32 %v1276, %v1401
      %v1436 = vadd.f32 %v1277, %v1406
      %v1437 = vadd.f32 %v1278, %v1411
      %v1438 = vadd.f32 %v1279, %v1416
      %v1439 = vadd.f32 %v1280, %v1421
      %v1440 = vadd.f32 %v1281, %v1426
      %v1441 = vadd.f32 %v1282, %v1431
      %v1442 = vmax.f32 %v1434, 0.0
      %v1443 = vmax.f32 %v1435, 0.0
      %v1444 = vmax.f32 %v1436, 0.0
      %v1445 = vmax.f32 %v1437, 0.0
      %v1446 = vmax.f32 %v1438, 0.0
      %v1447 = vmax.f32 %v1439, 0.0
      %v1448 = vmax.f32 %v1440, 0.0
      %v1449 = vmax.f32 %v1441, 0.0
      %1458 = vrot.lane.b32.xlu0 %v1442, 72
      %v1459 = vpop.permute.xlu0 %1458
      %1460 = vrot.lane.b32.xlu0 %v1443, 72
      %v1461 = vpop.permute.xlu0 %1460
      %1462 = vrot.lane.b32.xlu0 %v1444, 72
      %v1463 = vpop.permute.xlu0 %1462
      %1464 = vrot.lane.b32.xlu0 %v1445, 72
      %v1465 = vpop.permute.xlu0 %1464
      %1466 = vrot.lane.b32.xlu0 %v1446, 72
      %v1467 = vpop.permute.xlu0 %1466
      %1468 = vrot.lane.b32.xlu0 %v1447, 72
      %v1469 = vpop.permute.xlu0 %1468
      %1470 = vrot.lane.b32.xlu0 %v1448, 72
      %v1471 = vpop.permute.xlu0 %1470
      %1472 = vrot.lane.b32.xlu0 %v1449, 72
      %v1473 = vpop.permute.xlu0 %1472
      %v1482 = vsel %vm986, %v925, %v1459
      %v1483 = vsel %vm986, %v926, %v1461
      %v1484 = vsel %vm986, %v927, %v1463
      %v1485 = vsel %vm986, %v928, %v1465
      %v1486 = vsel %vm986, %v929, %v1467
      %v1487 = vsel %vm986, %v930, %v1469
      %v1488 = vsel %vm986, %v931, %v1471
      %v1489 = vsel %vm986, %v932, %v1473
      %v1498 = vrot.slane %v1482, 7
      %v1499 = vrot.slane %v1483, 7
      %v1500 = vsel %vm384, %v1498, %v1499
      %v1501 = vrot.slane %v1484, 7
      %v1502 = vrot.slane %v1485, 7
      %v1503 = vsel %vm384, %v1501, %v1502
      %v1504 = vrot.slane %v1486, 7
      %v1505 = vrot.slane %v1487, 7
      %v1506 = vsel %vm384, %v1504, %v1505
      %v1507 = vrot.slane %v1488, 7
      %v1508 = vrot.slane %v1489, 7
      %v1509 = vsel %vm384, %v1507, %v1508
      %v1518 = vsel %vm384, 0.0, %v1498
      %v1519 = vsel %vm384, 0.0, %v1501
      %v1520 = vsel %vm384, 0.0, %v1504
      %v1521 = vsel %vm384, 0.0, %v1507
      %v1522 = vsel %vm384, %v1499, 0.0
      %v1523 = vsel %vm384, %v1502, 0.0
      %v1524 = vsel %vm384, %v1505, 0.0
      %v1525 = vsel %vm384, %v1508, 0.0
      %v1526 = vld [vmem:[%s6] sm:$0x1]
      %v1528 = vlaneseq
      %v1529 = vshrl.u32 %v1528, 7
      %v1530 = vsub.s32 0, %v1529
      %v1531 = vrot.slane %v1526, %v1530
      %v1533 = vadd.f32 %v1531, 0.0
      %v1534 = vld [vmem:[%s5] sm:$0xff]
      %v1535 = vld [vmem:[%s5 + $0x8] sm:$0xff]
      %v1536 = vld [vmem:[%s5 + $0x10] sm:$0xff]
      %v1537 = vld [vmem:[%s5 + $0x18] sm:$0xff]
      %v1538 = vld [vmem:[%s5 + $0x20] sm:$0xff]
      %v1539 = vld [vmem:[%s5 + $0x28] sm:$0xff]
      %v1540 = vld [vmem:[%s5 + $0x30] sm:$0xff]
      %v1541 = vld [vmem:[%s5 + $0x38] sm:$0xff]
      %v1542 = vld [vmem:[%s5 + $0x40] sm:$0xff]
      %v1543 = vld [vmem:[%s5 + $0x48] sm:$0xff]
      %vm1544 = vcmask 654336
      %v1546 = vsel %vm1544, %v1518, 0
      %v1548 = vsel %vm1544, %v1500, 0
      %v1551 = vsel %vm1544, %v1519, 0
      %v1553 = vsel %vm1544, %v1503, 0
      %v1556 = vsel %vm1544, %v1520, 0
      %v1558 = vsel %vm1544, %v1506, 0
      %v1561 = vsel %vm1544, %v1521, 0
      %v1563 = vsel %vm1544, %v1509, 0
      %1565 = vmatprep.subr.mxu0 0.0
      %1566 = vmatpush1.msra.mxu0 %v1534
      %1567 = vmatprep.subr.mxu0 0.0
      %1568 = vmatpush1.msra.mxu0 %v1535
      %1569 = vmatprep.subr.mxu0 0.0
      %1570 = vmatpush1.msra.mxu0 %v1536
      %1571 = vmatprep.subr.mxu0 0.0
      %1572 = vmatpush1.msra.mxu0 %v1537
      %1573 = vmatprep.subr.mxu0 0.0
      %1574 = vmatpush1.msra.mxu0 %v1538
      %1575 = vmatprep.subr.mxu0 0.0
      %1576 = vmatpush1.msra.mxu0 %v1539
      %1577 = vmatprep.subr.mxu0 0.0
      %1578 = vmatpush1.msra.mxu0 %v1540
      %1579 = vmatprep.subr.mxu0 0.0
      %1580 = vmatpush1.msra.mxu0 %v1541
      %1581 = vmatprep.subr.mxu0 0.0
      %1582 = vmatpush1.msra.mxu0 %v1542
      %1583 = vmatprep.subr.mxu0 0.0
      %1584 = vmatpush1.msra.mxu0 %v1543
      %1585 = vmatprep.subr.mxu0 0.0
      %1586 = vmatpush1.msra.mxu0 0.0
      %1587 = vmatprep.subr.mxu0 0.0
      %1588 = vmatpush1.msra.mxu0 0.0
      %1589 = vmatprep.subr.mxu0 0.0
      %1590 = vmatpush1.msra.mxu0 0.0
      %1591 = vmatprep.subr.mxu0 0.0
      %1592 = vmatpush1.msra.mxu0 0.0
      %1593 = vmatprep.subr.mxu0 0.0
      %1594 = vmatpush1.msra.mxu0 0.0
      %1595 = vmatprep.subr.mxu0 0.0
      %1596 = vmatpush1.msra.mxu0 0.0
      %1597 = vmatprep.subr.mxu0 0.0
      %1598 = vmatpush1.msra.mxu0 0.0
      %1599 = vmatprep.subr.mxu0 0.0
      %1600 = vmatpush1.msra.mxu0 0.0
      %1601 = vmatprep.subr.mxu0 0.0
      %1602 = vmatpush1.msra.mxu0 0.0
      %1603 = vmatprep.subr.mxu0 0.0
      %1604 = vmatpush1.msra.mxu0 0.0
      %1605 = vmatprep.subr.mxu0 0.0
      %1606 = vmatpush1.msra.mxu0 0.0
      %1607 = vmatprep.subr.mxu0 0.0
      %1608 = vmatpush1.msra.mxu0 0.0
      %1609 = vmatprep.subr.mxu0 0.0
      %1610 = vmatpush1.msra.mxu0 0.0
      %1611 = vmatprep.subr.mxu0 0.0
      %1612 = vmatpush1.msra.mxu0 0.0
      %1613 = vmatprep.subr.mxu0 0.0
      %1614 = vmatpush1.msra.mxu0 0.0
      %1615 = vmatprep.subr.mxu0 0.0
      %1616 = vmatpush1.msra.mxu0 0.0
      %1617 = vmatprep.subr.mxu0 0.0
      %1618 = vmatpush1.msra.mxu0 0.0
      %1619 = vmatprep.subr.mxu0 0.0
      %1620 = vmatpush1.msra.mxu0 0.0
      %1621 = vmatprep.subr.mxu0 0.0
      %1622 = vmatpush1.msra.mxu0 0.0
      %1623 = vmatprep.subr.mxu0 0.0
      %1624 = vmatpush1.msra.mxu0 0.0
      %1625 = vmatprep.subr.mxu0 0.0
      %1626 = vmatpush1.msra.mxu0 0.0
      %1627 = vmatprep.subr.mxu0 0.0
      %1628 = vmatpush1.msra.mxu0 0.0
      %1629 = vmatprep.mubr.f32.mxu0 0.0
      %1630 = vmatmul.mubr.f32.gmra.mrb[0].mxu0 %v1546
      %v1631 = vpop.f32.mrb[0].mxu0
      %v1632 = vadd.f32 0.0, %v1631
      %v1633 = vpop.f32.mrb[0].mxu0
      %1634 = vmatprep.mubr.f32.mxu0 0.0
      %1635 = vmatmul.mubr.f32.gmra.mrb[0].mxu0 %v1548
      %v1636 = vpop.f32.mrb[0].mxu0
      %v1637 = vadd.f32 0.0, %v1636
      %v1638 = vpop.f32.mrb[0].mxu0
      %1639 = vmatprep.mubr.f32.mxu0 0.0
      %1640 = vmatmul.mubr.f32.gmra.mrb[0].mxu0 %v1551
      %v1641 = vpop.f32.mrb[0].mxu0
      %v1642 = vadd.f32 0.0, %v1641
      %v1643 = vpop.f32.mrb[0].mxu0
      %1644 = vmatprep.mubr.f32.mxu0 0.0
      %1645 = vmatmul.mubr.f32.gmra.mrb[0].mxu0 %v1553
      %v1646 = vpop.f32.mrb[0].mxu0
      %v1647 = vadd.f32 0.0, %v1646
      %v1648 = vpop.f32.mrb[0].mxu0
      %1649 = vmatprep.mubr.f32.mxu0 0.0
      %1650 = vmatmul.mubr.f32.gmra.mrb[0].mxu0 %v1556
      %v1651 = vpop.f32.mrb[0].mxu0
      %v1652 = vadd.f32 0.0, %v1651
      %v1653 = vpop.f32.mrb[0].mxu0
      %1654 = vmatprep.mubr.f32.mxu0 0.0
      %1655 = vmatmul.mubr.f32.gmra.mrb[0].mxu0 %v1558
      %v1656 = vpop.f32.mrb[0].mxu0
      %v1657 = vadd.f32 0.0, %v1656
      %v1658 = vpop.f32.mrb[0].mxu0
      %1659 = vmatprep.mubr.f32.mxu0 0.0
      %1660 = vmatmul.mubr.f32.gmra.mrb[0].mxu0 %v1561
      %v1661 = vpop.f32.mrb[0].mxu0
      %v1662 = vadd.f32 0.0, %v1661
      %v1663 = vpop.f32.mrb[0].mxu0
      %1664 = vmatprep.mubr.f32.mxu0 0.0
      %1665 = vmatmul.mubr.f32.gmra.mrb[0].mxu0 %v1563
      %v1666 = vpop.f32.mrb[0].mxu0
      %v1667 = vadd.f32 0.0, %v1666
      %v1668 = vpop.f32.mrb[0].mxu0
      %1669 = vdwg.mxu0
      %v1670 = vadd.f32 %v1533, %v1632
      %v1671 = vadd.f32 %v1533, %v1637
      %v1672 = vadd.f32 %v1533, %v1642
      %v1673 = vadd.f32 %v1533, %v1647
      %v1674 = vadd.f32 %v1533, %v1652
      %v1675 = vadd.f32 %v1533, %v1657
      %v1676 = vadd.f32 %v1533, %v1662
      %v1677 = vadd.f32 %v1533, %v1667
      %v1682 = vrot.slane %v1518, 1
      %v1683 = vrot.slane %v1500, 1
      %v1684 = vsel %vm567, %v1682, %v1683
      %v1685 = vrot.slane %v1522, 1
      %v1686 = vsel %vm567, %v1683, %v1685
      %v1687 = vrot.slane %v1519, 1
      %v1688 = vrot.slane %v1503, 1
      %v1689 = vsel %vm567, %v1687, %v1688
      %v1690 = vrot.slane %v1523, 1
      %v1691 = vsel %vm567, %v1688, %v1690
      %v1692 = vrot.slane %v1520, 1
      %v1693 = vrot.slane %v1506, 1
      %v1694 = vsel %vm567, %v1692, %v1693
      %v1695 = vrot.slane %v1524, 1
      %v1696 = vsel %vm567, %v1693, %v1695
      %v1697 = vrot.slane %v1521, 1
      %v1698 = vrot.slane %v1509, 1
      %v1699 = vsel %vm567, %v1697, %v1698
      %v1700 = vrot.slane %v1525, 1
      %v1701 = vsel %vm567, %v1698, %v1700
      %s1702 = scalar_lea.vmem %s5, 80
      %v1703 = vld [vmem:[%s1702] sm:$0xff]
      %v1704 = vld [vmem:[%s1702 + $0x8] sm:$0xff]
      %v1705 = vld [vmem:[%s1702 + $0x10] sm:$0xff]
      %v1706 = vld [vmem:[%s1702 + $0x18] sm:$0xff]
      %v1707 = vld [vmem:[%s1702 + $0x20] sm:$0xff]
      %v1708 = vld [vmem:[%s1702 + $0x28] sm:$0xff]
      %v1709 = vld [vmem:[%s1702 + $0x30] sm:$0xff]
      %v1710 = vld [vmem:[%s1702 + $0x38] sm:$0xff]
      %v1711 = vld [vmem:[%s1702 + $0x40] sm:$0xff]
      %v1712 = vld [vmem:[%s1702 + $0x48] sm:$0xff]
      %v1713 = vsel %vm1544, %v1684, 0
      %v1715 = vsel %vm1544, %v1686, 0
      %v1717 = vsel %vm1544, %v1689, 0
      %v1719 = vsel %vm1544, %v1691, 0
      %v1721 = vsel %vm1544, %v1694, 0
      %v1723 = vsel %vm1544, %v1696, 0
      %v1725 = vsel %vm1544, %v1699, 0
      %v1727 = vsel %vm1544, %v1701, 0
      %1729 = vmatprep.subr.mxu0 0.0
      %1730 = vmatpush1.msra.mxu0 %v1703
      %1731 = vmatprep.subr.mxu0 0.0
      %1732 = vmatpush1.msra.mxu0 %v1704
      %1733 = vmatprep.subr.mxu0 0.0
      %1734 = vmatpush1.msra.mxu0 %v1705
      %1735 = vmatprep.subr.mxu0 0.0
      %1736 = vmatpush1.msra.mxu0 %v1706
      %1737 = vmatprep.subr.mxu0 0.0
      %1738 = vmatpush1.msra.mxu0 %v1707
      %1739 = vmatprep.subr.mxu0 0.0
      %1740 = vmatpush1.msra.mxu0 %v1708
      %1741 = vmatprep.subr.mxu0 0.0
      %1742 = vmatpush1.msra.mxu0 %v1709
      %1743 = vmatprep.subr.mxu0 0.0
      %1744 = vmatpush1.msra.mxu0 %v1710
      %1745 = vmatprep.subr.mxu0 0.0
      %1746 = vmatpush1.msra.mxu0 %v1711
      %1747 = vmatprep.subr.mxu0 0.0
      %1748 = vmatpush1.msra.mxu0 %v1712
      %1749 = vmatprep.subr.mxu0 0.0
      %1750 = vmatpush1.msra.mxu0 0.0
      %1751 = vmatprep.subr.mxu0 0.0
      %1752 = vmatpush1.msra.mxu0 0.0
      %1753 = vmatprep.subr.mxu0 0.0
      %1754 = vmatpush1.msra.mxu0 0.0
      %1755 = vmatprep.subr.mxu0 0.0
      %1756 = vmatpush1.msra.mxu0 0.0
      %1757 = vmatprep.subr.mxu0 0.0
      %1758 = vmatpush1.msra.mxu0 0.0
      %1759 = vmatprep.subr.mxu0 0.0
      %1760 = vmatpush1.msra.mxu0 0.0
      %1761 = vmatprep.subr.mxu0 0.0
      %1762 = vmatpush1.msra.mxu0 0.0
      %1763 = vmatprep.subr.mxu0 0.0
      %1764 = vmatpush1.msra.mxu0 0.0
      %1765 = vmatprep.subr.mxu0 0.0
      %1766 = vmatpush1.msra.mxu0 0.0
      %1767 = vmatprep.subr.mxu0 0.0
      %1768 = vmatpush1.msra.mxu0 0.0
      %1769 = vmatprep.subr.mxu0 0.0
      %1770 = vmatpush1.msra.mxu0 0.0
      %1771 = vmatprep.subr.mxu0 0.0
      %1772 = vmatpush1.msra.mxu0 0.0
      %1773 = vmatprep.subr.mxu0 0.0
      %1774 = vmatpush1.msra.mxu0 0.0
      %1775 = vmatprep.subr.mxu0 0.0
      %1776 = vmatpush1.msra.mxu0 0.0
      %1777 = vmatprep.subr.mxu0 0.0
      %1778 = vmatpush1.msra.mxu0 0.0
      %1779 = vmatprep.subr.mxu0 0.0
      %1780 = vmatpush1.msra.mxu0 0.0
      %1781 = vmatprep.subr.mxu0 0.0
      %1782 = vmatpush1.msra.mxu0 0.0
      %1783 = vmatprep.subr.mxu0 0.0
      %1784 = vmatpush1.msra.mxu0 0.0
      %1785 = vmatprep.subr.mxu0 0.0
      %1786 = vmatpush1.msra.mxu0 0.0
      %1787 = vmatprep.subr.mxu0 0.0
      %1788 = vmatpush1.msra.mxu0 0.0
      %1789 = vmatprep.subr.mxu0 0.0
      %1790 = vmatpush1.msra.mxu0 0.0
      %1791 = vmatprep.subr.mxu0 0.0
      %1792 = vmatpush1.msra.mxu0 0.0
      %1793 = vmatprep.mubr.f32.mxu0 0.0
      %1794 = vmatmul.mubr.f32.gmra.mrb[0].mxu0 %v1713
      %v1795 = vpop.f32.mrb[0].mxu0
      %v1796 = vadd.f32 0.0, %v1795
      %v1797 = vpop.f32.mrb[0].mxu0
      %1798 = vmatprep.mubr.f32.mxu0 0.0
      %1799 = vmatmul.mubr.f32.gmra.mrb[0].mxu0 %v1715
      %v1800 = vpop.f32.mrb[0].mxu0
      %v1801 = vadd.f32 0.0, %v1800
      %v1802 = vpop.f32.mrb[0].mxu0
      %1803 = vmatprep.mubr.f32.mxu0 0.0
      %1804 = vmatmul.mubr.f32.gmra.mrb[0].mxu0 %v1717
      %v1805 = vpop.f32.mrb[0].mxu0
      %v1806 = vadd.f32 0.0, %v1805
      %v1807 = vpop.f32.mrb[0].mxu0
      %1808 = vmatprep.mubr.f32.mxu0 0.0
      %1809 = vmatmul.mubr.f32.gmra.mrb[0].mxu0 %v1719
      %v1810 = vpop.f32.mrb[0].mxu0
      %v1811 = vadd.f32 0.0, %v1810
      %v1812 = vpop.f32.mrb[0].mxu0
      %1813 = vmatprep.mubr.f32.mxu0 0.0
      %1814 = vmatmul.mubr.f32.gmra.mrb[0].mxu0 %v1721
      %v1815 = vpop.f32.mrb[0].mxu0
      %v1816 = vadd.f32 0.0, %v1815
      %v1817 = vpop.f32.mrb[0].mxu0
      %1818 = vmatprep.mubr.f32.mxu0 0.0
      %1819 = vmatmul.mubr.f32.gmra.mrb[0].mxu0 %v1723
      %v1820 = vpop.f32.mrb[0].mxu0
      %v1821 = vadd.f32 0.0, %v1820
      %v1822 = vpop.f32.mrb[0].mxu0
      %1823 = vmatprep.mubr.f32.mxu0 0.0
      %1824 = vmatmul.mubr.f32.gmra.mrb[0].mxu0 %v1725
      %v1825 = vpop.f32.mrb[0].mxu0
      %v1826 = vadd.f32 0.0, %v1825
      %v1827 = vpop.f32.mrb[0].mxu0
      %1828 = vmatprep.mubr.f32.mxu0 0.0
      %1829 = vmatmul.mubr.f32.gmra.mrb[0].mxu0 %v1727
      %v1830 = vpop.f32.mrb[0].mxu0
      %v1831 = vadd.f32 0.0, %v1830
      %v1832 = vpop.f32.mrb[0].mxu0
      %1833 = vdwg.mxu0
      %v1834 = vadd.f32 %v1670, %v1796
      %v1835 = vadd.f32 %v1671, %v1801
      %v1836 = vadd.f32 %v1672, %v1806
      %v1837 = vadd.f32 %v1673, %v1811
      %v1838 = vadd.f32 %v1674, %v1816
      %v1839 = vadd.f32 %v1675, %v1821
      %v1840 = vadd.f32 %v1676, %v1826
      %v1841 = vadd.f32 %v1677, %v1831
      %v1842 = vrot.slane %v1518, 2
      %v1843 = vrot.slane %v1500, 2
      %v1844 = vsel %vm726, %v1842, %v1843
      %v1845 = vrot.slane %v1522, 2
      %v1846 = vsel %vm726, %v1843, %v1845
      %v1847 = vrot.slane %v1519, 2
      %v1848 = vrot.slane %v1503, 2
      %v1849 = vsel %vm726, %v1847, %v1848
      %v1850 = vrot.slane %v1523, 2
      %v1851 = vsel %vm726, %v1848, %v1850
      %v1852 = vrot.slane %v1520, 2
      %v1853 = vrot.slane %v1506, 2
      %v1854 = vsel %vm726, %v1852, %v1853
      %v1855 = vrot.slane %v1524, 2
      %v1856 = vsel %vm726, %v1853, %v1855
      %v1857 = vrot.slane %v1521, 2
      %v1858 = vrot.slane %v1509, 2
      %v1859 = vsel %vm726, %v1857, %v1858
      %v1860 = vrot.slane %v1525, 2
      %v1861 = vsel %vm726, %v1858, %v1860
      %s1862 = scalar_lea.vmem %s5, 160
      %v1863 = vld [vmem:[%s1862] sm:$0xff]
      %v1864 = vld [vmem:[%s1862 + $0x8] sm:$0xff]
      %v1865 = vld [vmem:[%s1862 + $0x10] sm:$0xff]
      %v1866 = vld [vmem:[%s1862 + $0x18] sm:$0xff]
      %v1867 = vld [vmem:[%s1862 + $0x20] sm:$0xff]
      %v1868 = vld [vmem:[%s1862 + $0x28] sm:$0xff]
      %v1869 = vld [vmem:[%s1862 + $0x30] sm:$0xff]
      %v1870 = vld [vmem:[%s1862 + $0x38] sm:$0xff]
      %v1871 = vld [vmem:[%s1862 + $0x40] sm:$0xff]
      %v1872 = vld [vmem:[%s1862 + $0x48] sm:$0xff]
      %v1873 = vsel %vm1544, %v1844, 0
      %v1875 = vsel %vm1544, %v1846, 0
      %v1877 = vsel %vm1544, %v1849, 0
      %v1879 = vsel %vm1544, %v1851, 0
      %v1881 = vsel %vm1544, %v1854, 0
      %v1883 = vsel %vm1544, %v1856, 0
      %v1885 = vsel %vm1544, %v1859, 0
      %v1887 = vsel %vm1544, %v1861, 0
      %1889 = vmatprep.subr.mxu0 0.0
      %1890 = vmatpush1.msra.mxu0 %v1863
      %1891 = vmatprep.subr.mxu0 0.0
      %1892 = vmatpush1.msra.mxu0 %v1864
      %1893 = vmatprep.subr.mxu0 0.0
      %1894 = vmatpush1.msra.mxu0 %v1865
      %1895 = vmatprep.subr.mxu0 0.0
      %1896 = vmatpush1.msra.mxu0 %v1866
      %1897 = vmatprep.subr.mxu0 0.0
      %1898 = vmatpush1.msra.mxu0 %v1867
      %1899 = vmatprep.subr.mxu0 0.0
      %1900 = vmatpush1.msra.mxu0 %v1868
      %1901 = vmatprep.subr.mxu0 0.0
      %1902 = vmatpush1.msra.mxu0 %v1869
      %1903 = vmatprep.subr.mxu0 0.0
      %1904 = vmatpush1.msra.mxu0 %v1870
      %1905 = vmatprep.subr.mxu0 0.0
      %1906 = vmatpush1.msra.mxu0 %v1871
      %1907 = vmatprep.subr.mxu0 0.0
      %1908 = vmatpush1.msra.mxu0 %v1872
      %1909 = vmatprep.subr.mxu0 0.0
      %1910 = vmatpush1.msra.mxu0 0.0
      %1911 = vmatprep.subr.mxu0 0.0
      %1912 = vmatpush1.msra.mxu0 0.0
      %1913 = vmatprep.subr.mxu0 0.0
      %1914 = vmatpush1.msra.mxu0 0.0
      %1915 = vmatprep.subr.mxu0 0.0
      %1916 = vmatpush1.msra.mxu0 0.0
      %1917 = vmatprep.subr.mxu0 0.0
      %1918 = vmatpush1.msra.mxu0 0.0
      %1919 = vmatprep.subr.mxu0 0.0
      %1920 = vmatpush1.msra.mxu0 0.0
      %1921 = vmatprep.subr.mxu0 0.0
      %1922 = vmatpush1.msra.mxu0 0.0
      %1923 = vmatprep.subr.mxu0 0.0
      %1924 = vmatpush1.msra.mxu0 0.0
      %1925 = vmatprep.subr.mxu0 0.0
      %1926 = vmatpush1.msra.mxu0 0.0
      %1927 = vmatprep.subr.mxu0 0.0
      %1928 = vmatpush1.msra.mxu0 0.0
      %1929 = vmatprep.subr.mxu0 0.0
      %1930 = vmatpush1.msra.mxu0 0.0
      %1931 = vmatprep.subr.mxu0 0.0
      %1932 = vmatpush1.msra.mxu0 0.0
      %1933 = vmatprep.subr.mxu0 0.0
      %1934 = vmatpush1.msra.mxu0 0.0
      %1935 = vmatprep.subr.mxu0 0.0
      %1936 = vmatpush1.msra.mxu0 0.0
      %1937 = vmatprep.subr.mxu0 0.0
      %1938 = vmatpush1.msra.mxu0 0.0
      %1939 = vmatprep.subr.mxu0 0.0
      %1940 = vmatpush1.msra.mxu0 0.0
      %1941 = vmatprep.subr.mxu0 0.0
      %1942 = vmatpush1.msra.mxu0 0.0
      %1943 = vmatprep.subr.mxu0 0.0
      %1944 = vmatpush1.msra.mxu0 0.0
      %1945 = vmatprep.subr.mxu0 0.0
      %1946 = vmatpush1.msra.mxu0 0.0
      %1947 = vmatprep.subr.mxu0 0.0
      %1948 = vmatpush1.msra.mxu0 0.0
      %1949 = vmatprep.subr.mxu0 0.0
      %1950 = vmatpush1.msra.mxu0 0.0
      %1951 = vmatprep.subr.mxu0 0.0
      %1952 = vmatpush1.msra.mxu0 0.0
      %1953 = vmatprep.mubr.f32.mxu0 0.0
      %1954 = vmatmul.mubr.f32.gmra.mrb[0].mxu0 %v1873
      %v1955 = vpop.f32.mrb[0].mxu0
      %v1956 = vadd.f32 0.0, %v1955
      %v1957 = vpop.f32.mrb[0].mxu0
      %1958 = vmatprep.mubr.f32.mxu0 0.0
      %1959 = vmatmul.mubr.f32.gmra.mrb[0].mxu0 %v1875
      %v1960 = vpop.f32.mrb[0].mxu0
      %v1961 = vadd.f32 0.0, %v1960
      %v1962 = vpop.f32.mrb[0].mxu0
      %1963 = vmatprep.mubr.f32.mxu0 0.0
      %1964 = vmatmul.mubr.f32.gmra.mrb[0].mxu0 %v1877
      %v1965 = vpop.f32.mrb[0].mxu0
      %v1966 = vadd.f32 0.0, %v1965
      %v1967 = vpop.f32.mrb[0].mxu0
      %1968 = vmatprep.mubr.f32.mxu0 0.0
      %1969 = vmatmul.mubr.f32.gmra.mrb[0].mxu0 %v1879
      %v1970 = vpop.f32.mrb[0].mxu0
      %v1971 = vadd.f32 0.0, %v1970
      %v1972 = vpop.f32.mrb[0].mxu0
      %1973 = vmatprep.mubr.f32.mxu0 0.0
      %1974 = vmatmul.mubr.f32.gmra.mrb[0].mxu0 %v1881
      %v1975 = vpop.f32.mrb[0].mxu0
      %v1976 = vadd.f32 0.0, %v1975
      %v1977 = vpop.f32.mrb[0].mxu0
      %1978 = vmatprep.mubr.f32.mxu0 0.0
      %1979 = vmatmul.mubr.f32.gmra.mrb[0].mxu0 %v1883
      %v1980 = vpop.f32.mrb[0].mxu0
      %v1981 = vadd.f32 0.0, %v1980
      %v1982 = vpop.f32.mrb[0].mxu0
      %1983 = vmatprep.mubr.f32.mxu0 0.0
      %1984 = vmatmul.mubr.f32.gmra.mrb[0].mxu0 %v1885
      %v1985 = vpop.f32.mrb[0].mxu0
      %v1986 = vadd.f32 0.0, %v1985
      %v1987 = vpop.f32.mrb[0].mxu0
      %1988 = vmatprep.mubr.f32.mxu0 0.0
      %1989 = vmatmul.mubr.f32.gmra.mrb[0].mxu0 %v1887
      %v1990 = vpop.f32.mrb[0].mxu0
      %v1991 = vadd.f32 0.0, %v1990
      %v1992 = vpop.f32.mrb[0].mxu0
      %1993 = vdwg.mxu0
      %v1994 = vadd.f32 %v1834, %v1956
      %v1995 = vadd.f32 %v1835, %v1961
      %v1996 = vadd.f32 %v1836, %v1966
      %v1997 = vadd.f32 %v1837, %v1971
      %v1998 = vadd.f32 %v1838, %v1976
      %v1999 = vadd.f32 %v1839, %v1981
      %v2000 = vadd.f32 %v1840, %v1986
      %v2001 = vadd.f32 %v1841, %v1991
      %v2002 = vmax.f32 %v1994, 0.0
      %v2003 = vmax.f32 %v1995, 0.0
      %v2004 = vmax.f32 %v1996, 0.0
      %v2005 = vmax.f32 %v1997, 0.0
      %v2006 = vmax.f32 %v1998, 0.0
      %v2007 = vmax.f32 %v1999, 0.0
      %v2008 = vmax.f32 %v2000, 0.0
      %v2009 = vmax.f32 %v2001, 0.0
      %2018 = vrot.lane.b32.xlu0 %v2002, 80
      %v2019 = vpop.permute.xlu0 %2018
      %2020 = vrot.lane.b32.xlu0 %v2003, 80
      %v2021 = vpop.permute.xlu0 %2020
      %2022 = vrot.lane.b32.xlu0 %v2004, 80
      %v2023 = vpop.permute.xlu0 %2022
      %2024 = vrot.lane.b32.xlu0 %v2005, 80
      %v2025 = vpop.permute.xlu0 %2024
      %2026 = vrot.lane.b32.xlu0 %v2006, 80
      %v2027 = vpop.permute.xlu0 %2026
      %2028 = vrot.lane.b32.xlu0 %v2007, 80
      %v2029 = vpop.permute.xlu0 %2028
      %2030 = vrot.lane.b32.xlu0 %v2008, 80
      %v2031 = vpop.permute.xlu0 %2030
      %2032 = vrot.lane.b32.xlu0 %v2009, 80
      %v2033 = vpop.permute.xlu0 %2032
      %v2042 = vsel %vm1544, %v1482, %v2019
      %v2043 = vsel %vm1544, %v1483, %v2021
      %v2044 = vsel %vm1544, %v1484, %v2023
      %v2045 = vsel %vm1544, %v1485, %v2025
      %v2046 = vsel %vm1544, %v1486, %v2027
      %v2047 = vsel %vm1544, %v1487, %v2029
      %v2048 = vsel %vm1544, %v1488, %v2031
      %v2049 = vsel %vm1544, %v1489, %v2033
      %v2058 = vrot.slane %v2042, 7
      %v2059 = vrot.slane %v2043, 7
      %v2060 = vsel %vm384, %v2058, %v2059
      %v2061 = vrot.slane %v2044, 7
      %v2062 = vrot.slane %v2045, 7
      %v2063 = vsel %vm384, %v2061, %v2062
      %v2064 = vrot.slane %v2046, 7
      %v2065 = vrot.slane %v2047, 7
      %v2066 = vsel %vm384, %v2064, %v2065
      %v2067 = vrot.slane %v2048, 7
      %v2068 = vrot.slane %v2049, 7
      %v2069 = vsel %vm384, %v2067, %v2068
      %v2078 = vsel %vm384, 0.0, %v2058
      %v2079 = vsel %vm384, 0.0, %v2061
      %v2080 = vsel %vm384, 0.0, %v2064
      %v2081 = vsel %vm384, 0.0, %v2067
      %v2082 = vsel %vm384, %v2059, 0.0
      %v2083 = vsel %vm384, %v2062, 0.0
      %v2084 = vsel %vm384, %v2065, 0.0
      %v2085 = vsel %vm384, %v2068, 0.0
      %v2086 = vld [vmem:[%s8] sm:$0x1]
      %v2088 = vlaneseq
      %v2089 = vshrl.u32 %v2088, 7
      %v2090 = vsub.s32 0, %v2089
      %v2091 = vrot.slane %v2086, %v2090
      %v2093 = vadd.f32 %v2091, 0.0
      %v2094 = vld [vmem:[%s7] sm:$0xff]
      %v2095 = vld [vmem:[%s7 + $0x8] sm:$0xff]
      %v2096 = vld [vmem:[%s7 + $0x10] sm:$0xff]
      %v2097 = vld [vmem:[%s7 + $0x18] sm:$0xff]
      %v2098 = vld [vmem:[%s7 + $0x20] sm:$0xff]
      %v2099 = vld [vmem:[%s7 + $0x28] sm:$0xff]
      %v2100 = vld [vmem:[%s7 + $0x30] sm:$0xff]
      %v2101 = vld [vmem:[%s7 + $0x38] sm:$0xff]
      %v2102 = vld [vmem:[%s7 + $0x40] sm:$0xff]
      %v2103 = vld [vmem:[%s7 + $0x48] sm:$0xff]
      %v2104 = vld [vmem:[%s7 + $0x50] sm:$0xff]
      %vm2105 = vcmask 719872
      %v2107 = vsel %vm2105, %v2078, 0
      %v2109 = vsel %vm2105, %v2060, 0
      %v2112 = vsel %vm2105, %v2079, 0
      %v2114 = vsel %vm2105, %v2063, 0
      %v2117 = vsel %vm2105, %v2080, 0
      %v2119 = vsel %vm2105, %v2066, 0
      %v2122 = vsel %vm2105, %v2081, 0
      %v2124 = vsel %vm2105, %v2069, 0
      %2126 = vmatprep.subr.mxu0 0.0
      %2127 = vmatpush1.msra.mxu0 %v2094
      %2128 = vmatprep.subr.mxu0 0.0
      %2129 = vmatpush1.msra.mxu0 %v2095
      %2130 = vmatprep.subr.mxu0 0.0
      %2131 = vmatpush1.msra.mxu0 %v2096
      %2132 = vmatprep.subr.mxu0 0.0
      %2133 = vmatpush1.msra.mxu0 %v2097
      %2134 = vmatprep.subr.mxu0 0.0
      %2135 = vmatpush1.msra.mxu0 %v2098
      %2136 = vmatprep.subr.mxu0 0.0
      %2137 = vmatpush1.msra.mxu0 %v2099
      %2138 = vmatprep.subr.mxu0 0.0
      %2139 = vmatpush1.msra.mxu0 %v2100
      %2140 = vmatprep.subr.mxu0 0.0
      %2141 = vmatpush1.msra.mxu0 %v2101
      %2142 = vmatprep.subr.mxu0 0.0
      %2143 = vmatpush1.msra.mxu0 %v2102
      %2144 = vmatprep.subr.mxu0 0.0
      %2145 = vmatpush1.msra.mxu0 %v2103
      %2146 = vmatprep.subr.mxu0 0.0
      %2147 = vmatpush1.msra.mxu0 %v2104
      %2148 = vmatprep.subr.mxu0 0.0
      %2149 = vmatpush1.msra.mxu0 0.0
      %2150 = vmatprep.subr.mxu0 0.0
      %2151 = vmatpush1.msra.mxu0 0.0
      %2152 = vmatprep.subr.mxu0 0.0
      %2153 = vmatpush1.msra.mxu0 0.0
      %2154 = vmatprep.subr.mxu0 0.0
      %2155 = vmatpush1.msra.mxu0 0.0
      %2156 = vmatprep.subr.mxu0 0.0
      %2157 = vmatpush1.msra.mxu0 0.0
      %2158 = vmatprep.subr.mxu0 0.0
      %2159 = vmatpush1.msra.mxu0 0.0
      %2160 = vmatprep.subr.mxu0 0.0
      %2161 = vmatpush1.msra.mxu0 0.0
      %2162 = vmatprep.subr.mxu0 0.0
      %2163 = vmatpush1.msra.mxu0 0.0
      %2164 = vmatprep.subr.mxu0 0.0
      %2165 = vmatpush1.msra.mxu0 0.0
      %2166 = vmatprep.subr.mxu0 0.0
      %2167 = vmatpush1.msra.mxu0 0.0
      %2168 = vmatprep.subr.mxu0 0.0
      %2169 = vmatpush1.msra.mxu0 0.0
      %2170 = vmatprep.subr.mxu0 0.0
      %2171 = vmatpush1.msra.mxu0 0.0
      %2172 = vmatprep.subr.mxu0 0.0
      %2173 = vmatpush1.msra.mxu0 0.0
      %2174 = vmatprep.subr.mxu0 0.0
      %2175 = vmatpush1.msra.mxu0 0.0
      %2176 = vmatprep.subr.mxu0 0.0
      %2177 = vmatpush1.msra.mxu0 0.0
      %2178 = vmatprep.subr.mxu0 0.0
      %2179 = vmatpush1.msra.mxu0 0.0
      %2180 = vmatprep.subr.mxu0 0.0
      %2181 = vmatpush1.msra.mxu0 0.0
      %2182 = vmatprep.subr.mxu0 0.0
      %2183 = vmatpush1.msra.mxu0 0.0
      %2184 = vmatprep.subr.mxu0 0.0
      %2185 = vmatpush1.msra.mxu0 0.0
      %2186 = vmatprep.subr.mxu0 0.0
      %2187 = vmatpush1.msra.mxu0 0.0
      %2188 = vmatprep.subr.mxu0 0.0
      %2189 = vmatpush1.msra.mxu0 0.0
      %2190 = vmatprep.mubr.f32.mxu0 0.0
      %2191 = vmatmul.mubr.f32.gmra.mrb[0].mxu0 %v2107
      %v2192 = vpop.f32.mrb[0].mxu0
      %v2193 = vadd.f32 0.0, %v2192
      %v2194 = vpop.f32.mrb[0].mxu0
      %2195 = vmatprep.mubr.f32.mxu0 0.0
      %2196 = vmatmul.mubr.f32.gmra.mrb[0].mxu0 %v2109
      %v2197 = vpop.f32.mrb[0].mxu0
      %v2198 = vadd.f32 0.0, %v2197
      %v2199 = vpop.f32.mrb[0].mxu0
      %2200 = vmatprep.mubr.f32.mxu0 0.0
      %2201 = vmatmul.mubr.f32.gmra.mrb[0].mxu0 %v2112
      %v2202 = vpop.f32.mrb[0].mxu0
      %v2203 = vadd.f32 0.0, %v2202
      %v2204 = vpop.f32.mrb[0].mxu0
      %2205 = vmatprep.mubr.f32.mxu0 0.0
      %2206 = vmatmul.mubr.f32.gmra.mrb[0].mxu0 %v2114
      %v2207 = vpop.f32.mrb[0].mxu0
      %v2208 = vadd.f32 0.0, %v2207
      %v2209 = vpop.f32.mrb[0].mxu0
      %2210 = vmatprep.mubr.f32.mxu0 0.0
      %2211 = vmatmul.mubr.f32.gmra.mrb[0].mxu0 %v2117
      %v2212 = vpop.f32.mrb[0].mxu0
      %v2213 = vadd.f32 0.0, %v2212
      %v2214 = vpop.f32.mrb[0].mxu0
      %2215 = vmatprep.mubr.f32.mxu0 0.0
      %2216 = vmatmul.mubr.f32.gmra.mrb[0].mxu0 %v2119
      %v2217 = vpop.f32.mrb[0].mxu0
      %v2218 = vadd.f32 0.0, %v2217
      %v2219 = vpop.f32.mrb[0].mxu0
      %2220 = vmatprep.mubr.f32.mxu0 0.0
      %2221 = vmatmul.mubr.f32.gmra.mrb[0].mxu0 %v2122
      %v2222 = vpop.f32.mrb[0].mxu0
      %v2223 = vadd.f32 0.0, %v2222
      %v2224 = vpop.f32.mrb[0].mxu0
      %2225 = vmatprep.mubr.f32.mxu0 0.0
      %2226 = vmatmul.mubr.f32.gmra.mrb[0].mxu0 %v2124
      %v2227 = vpop.f32.mrb[0].mxu0
      %v2228 = vadd.f32 0.0, %v2227
      %v2229 = vpop.f32.mrb[0].mxu0
      %2230 = vdwg.mxu0
      %v2231 = vadd.f32 %v2093, %v2193
      %v2232 = vadd.f32 %v2093, %v2198
      %v2233 = vadd.f32 %v2093, %v2203
      %v2234 = vadd.f32 %v2093, %v2208
      %v2235 = vadd.f32 %v2093, %v2213
      %v2236 = vadd.f32 %v2093, %v2218
      %v2237 = vadd.f32 %v2093, %v2223
      %v2238 = vadd.f32 %v2093, %v2228
      %v2243 = vrot.slane %v2078, 1
      %v2244 = vrot.slane %v2060, 1
      %v2245 = vsel %vm567, %v2243, %v2244
      %v2246 = vrot.slane %v2082, 1
      %v2247 = vsel %vm567, %v2244, %v2246
      %v2248 = vrot.slane %v2079, 1
      %v2249 = vrot.slane %v2063, 1
      %v2250 = vsel %vm567, %v2248, %v2249
      %v2251 = vrot.slane %v2083, 1
      %v2252 = vsel %vm567, %v2249, %v2251
      %v2253 = vrot.slane %v2080, 1
      %v2254 = vrot.slane %v2066, 1
      %v2255 = vsel %vm567, %v2253, %v2254
      %v2256 = vrot.slane %v2084, 1
      %v2257 = vsel %vm567, %v2254, %v2256
      %v2258 = vrot.slane %v2081, 1
      %v2259 = vrot.slane %v2069, 1
      %v2260 = vsel %vm567, %v2258, %v2259
      %v2261 = vrot.slane %v2085, 1
      %v2262 = vsel %vm567, %v2259, %v2261
      %s2263 = scalar_lea.vmem %s7, 88
      %v2264 = vld [vmem:[%s2263] sm:$0xff]
      %v2265 = vld [vmem:[%s2263 + $0x8] sm:$0xff]
      %v2266 = vld [vmem:[%s2263 + $0x10] sm:$0xff]
      %v2267 = vld [vmem:[%s2263 + $0x18] sm:$0xff]
      %v2268 = vld [vmem:[%s2263 + $0x20] sm:$0xff]
      %v2269 = vld [vmem:[%s2263 + $0x28] sm:$0xff]
      %v2270 = vld [vmem:[%s2263 + $0x30] sm:$0xff]
      %v2271 = vld [vmem:[%s2263 + $0x38] sm:$0xff]
      %v2272 = vld [vmem:[%s2263 + $0x40] sm:$0xff]
      %v2273 = vld [vmem:[%s2263 + $0x48] sm:$0xff]
      %v2274 = vld [vmem:[%s2263 + $0x50] sm:$0xff]
      %v2275 = vsel %vm2105, %v2245, 0
      %v2277 = vsel %vm2105, %v2247, 0
      %v2279 = vsel %vm2105, %v2250, 0
      %v2281 = vsel %vm2105, %v2252, 0
      %v2283 = vsel %vm2105, %v2255, 0
      %v2285 = vsel %vm2105, %v2257, 0
      %v2287 = vsel %vm2105, %v2260, 0
      %v2289 = vsel %vm2105, %v2262, 0
      %2291 = vmatprep.subr.mxu0 0.0
      %2292 = vmatpush1.msra.mxu0 %v2264
      %2293 = vmatprep.subr.mxu0 0.0
      %2294 = vmatpush1.msra.mxu0 %v2265
      %2295 = vmatprep.subr.mxu0 0.0
      %2296 = vmatpush1.msra.mxu0 %v2266
      %2297 = vmatprep.subr.mxu0 0.0
      %2298 = vmatpush1.msra.mxu0 %v2267
      %2299 = vmatprep.subr.mxu0 0.0
      %2300 = vmatpush1.msra.mxu0 %v2268
      %2301 = vmatprep.subr.mxu0 0.0
      %2302 = vmatpush1.msra.mxu0 %v2269
      %2303 = vmatprep.subr.mxu0 0.0
      %2304 = vmatpush1.msra.mxu0 %v2270
      %2305 = vmatprep.subr.mxu0 0.0
      %2306 = vmatpush1.msra.mxu0 %v2271
      %2307 = vmatprep.subr.mxu0 0.0
      %2308 = vmatpush1.msra.mxu0 %v2272
      %2309 = vmatprep.subr.mxu0 0.0
      %2310 = vmatpush1.msra.mxu0 %v2273
      %2311 = vmatprep.subr.mxu0 0.0
      %2312 = vmatpush1.msra.mxu0 %v2274
      %2313 = vmatprep.subr.mxu0 0.0
      %2314 = vmatpush1.msra.mxu0 0.0
      %2315 = vmatprep.subr.mxu0 0.0
      %2316 = vmatpush1.msra.mxu0 0.0
      %2317 = vmatprep.subr.mxu0 0.0
      %2318 = vmatpush1.msra.mxu0 0.0
      %2319 = vmatprep.subr.mxu0 0.0
      %2320 = vmatpush1.msra.mxu0 0.0
      %2321 = vmatprep.subr.mxu0 0.0
      %2322 = vmatpush1.msra.mxu0 0.0
      %2323 = vmatprep.subr.mxu0 0.0
      %2324 = vmatpush1.msra.mxu0 0.0
      %2325 = vmatprep.subr.mxu0 0.0
      %2326 = vmatpush1.msra.mxu0 0.0
      %2327 = vmatprep.subr.mxu0 0.0
      %2328 = vmatpush1.msra.mxu0 0.0
      %2329 = vmatprep.subr.mxu0 0.0
      %2330 = vmatpush1.msra.mxu0 0.0
      %2331 = vmatprep.subr.mxu0 0.0
      %2332 = vmatpush1.msra.mxu0 0.0
      %2333 = vmatprep.subr.mxu0 0.0
      %2334 = vmatpush1.msra.mxu0 0.0
      %2335 = vmatprep.subr.mxu0 0.0
      %2336 = vmatpush1.msra.mxu0 0.0
      %2337 = vmatprep.subr.mxu0 0.0
      %2338 = vmatpush1.msra.mxu0 0.0
      %2339 = vmatprep.subr.mxu0 0.0
      %2340 = vmatpush1.msra.mxu0 0.0
      %2341 = vmatprep.subr.mxu0 0.0
      %2342 = vmatpush1.msra.mxu0 0.0
      %2343 = vmatprep.subr.mxu0 0.0
      %2344 = vmatpush1.msra.mxu0 0.0
      %2345 = vmatprep.subr.mxu0 0.0
      %2346 = vmatpush1.msra.mxu0 0.0
      %2347 = vmatprep.subr.mxu0 0.0
      %2348 = vmatpush1.msra.mxu0 0.0
      %2349 = vmatprep.subr.mxu0 0.0
      %2350 = vmatpush1.msra.mxu0 0.0
      %2351 = vmatprep.subr.mxu0 0.0
      %2352 = vmatpush1.msra.mxu0 0.0
      %2353 = vmatprep.subr.mxu0 0.0
      %2354 = vmatpush1.msra.mxu0 0.0
      %2355 = vmatprep.mubr.f32.mxu0 0.0
      %2356 = vmatmul.mubr.f32.gmra.mrb[0].mxu0 %v2275
      %v2357 = vpop.f32.mrb[0].mxu0
      %v2358 = vadd.f32 0.0, %v2357
      %v2359 = vpop.f32.mrb[0].mxu0
      %2360 = vmatprep.mubr.f32.mxu0 0.0
      %2361 = vmatmul.mubr.f32.gmra.mrb[0].mxu0 %v2277
      %v2362 = vpop.f32.mrb[0].mxu0
      %v2363 = vadd.f32 0.0, %v2362
      %v2364 = vpop.f32.mrb[0].mxu0
      %2365 = vmatprep.mubr.f32.mxu0 0.0
      %2366 = vmatmul.mubr.f32.gmra.mrb[0].mxu0 %v2279
      %v2367 = vpop.f32.mrb[0].mxu0
      %v2368 = vadd.f32 0.0, %v2367
      %v2369 = vpop.f32.mrb[0].mxu0
      %2370 = vmatprep.mubr.f32.mxu0 0.0
      %2371 = vmatmul.mubr.f32.gmra.mrb[0].mxu0 %v2281
      %v2372 = vpop.f32.mrb[0].mxu0
      %v2373 = vadd.f32 0.0, %v2372
      %v2374 = vpop.f32.mrb[0].mxu0
      %2375 = vmatprep.mubr.f32.mxu0 0.0
      %2376 = vmatmul.mubr.f32.gmra.mrb[0].mxu0 %v2283
      %v2377 = vpop.f32.mrb[0].mxu0
      %v2378 = vadd.f32 0.0, %v2377
      %v2379 = vpop.f32.mrb[0].mxu0
      %2380 = vmatprep.mubr.f32.mxu0 0.0
      %2381 = vmatmul.mubr.f32.gmra.mrb[0].mxu0 %v2285
      %v2382 = vpop.f32.mrb[0].mxu0
      %v2383 = vadd.f32 0.0, %v2382
      %v2384 = vpop.f32.mrb[0].mxu0
      %2385 = vmatprep.mubr.f32.mxu0 0.0
      %2386 = vmatmul.mubr.f32.gmra.mrb[0].mxu0 %v2287
      %v2387 = vpop.f32.mrb[0].mxu0
      %v2388 = vadd.f32 0.0, %v2387
      %v2389 = vpop.f32.mrb[0].mxu0
      %2390 = vmatprep.mubr.f32.mxu0 0.0
      %2391 = vmatmul.mubr.f32.gmra.mrb[0].mxu0 %v2289
      %v2392 = vpop.f32.mrb[0].mxu0
      %v2393 = vadd.f32 0.0, %v2392
      %v2394 = vpop.f32.mrb[0].mxu0
      %2395 = vdwg.mxu0
      %v2396 = vadd.f32 %v2231, %v2358
      %v2397 = vadd.f32 %v2232, %v2363
      %v2398 = vadd.f32 %v2233, %v2368
      %v2399 = vadd.f32 %v2234, %v2373
      %v2400 = vadd.f32 %v2235, %v2378
      %v2401 = vadd.f32 %v2236, %v2383
      %v2402 = vadd.f32 %v2237, %v2388
      %v2403 = vadd.f32 %v2238, %v2393
      %v2404 = vrot.slane %v2078, 2
      %v2405 = vrot.slane %v2060, 2
      %v2406 = vsel %vm726, %v2404, %v2405
      %v2407 = vrot.slane %v2082, 2
      %v2408 = vsel %vm726, %v2405, %v2407
      %v2409 = vrot.slane %v2079, 2
      %v2410 = vrot.slane %v2063, 2
      %v2411 = vsel %vm726, %v2409, %v2410
      %v2412 = vrot.slane %v2083, 2
      %v2413 = vsel %vm726, %v2410, %v2412
      %v2414 = vrot.slane %v2080, 2
      %v2415 = vrot.slane %v2066, 2
      %v2416 = vsel %vm726, %v2414, %v2415
      %v2417 = vrot.slane %v2084, 2
      %v2418 = vsel %vm726, %v2415, %v2417
      %v2419 = vrot.slane %v2081, 2
      %v2420 = vrot.slane %v2069, 2
      %v2421 = vsel %vm726, %v2419, %v2420
      %v2422 = vrot.slane %v2085, 2
      %v2423 = vsel %vm726, %v2420, %v2422
      %s2424 = scalar_lea.vmem %s7, 176
      %v2425 = vld [vmem:[%s2424] sm:$0xff]
      %v2426 = vld [vmem:[%s2424 + $0x8] sm:$0xff]
      %v2427 = vld [vmem:[%s2424 + $0x10] sm:$0xff]
      %v2428 = vld [vmem:[%s2424 + $0x18] sm:$0xff]
      %v2429 = vld [vmem:[%s2424 + $0x20] sm:$0xff]
      %v2430 = vld [vmem:[%s2424 + $0x28] sm:$0xff]
      %v2431 = vld [vmem:[%s2424 + $0x30] sm:$0xff]
      %v2432 = vld [vmem:[%s2424 + $0x38] sm:$0xff]
      %v2433 = vld [vmem:[%s2424 + $0x40] sm:$0xff]
      %v2434 = vld [vmem:[%s2424 + $0x48] sm:$0xff]
      %v2435 = vld [vmem:[%s2424 + $0x50] sm:$0xff]
      %v2436 = vsel %vm2105, %v2406, 0
      %v2438 = vsel %vm2105, %v2408, 0
      %v2440 = vsel %vm2105, %v2411, 0
      %v2442 = vsel %vm2105, %v2413, 0
      %v2444 = vsel %vm2105, %v2416, 0
      %v2446 = vsel %vm2105, %v2418, 0
      %v2448 = vsel %vm2105, %v2421, 0
      %v2450 = vsel %vm2105, %v2423, 0
      %2452 = vmatprep.subr.mxu0 0.0
      %2453 = vmatpush1.msra.mxu0 %v2425
      %2454 = vmatprep.subr.mxu0 0.0
      %2455 = vmatpush1.msra.mxu0 %v2426
      %2456 = vmatprep.subr.mxu0 0.0
      %2457 = vmatpush1.msra.mxu0 %v2427
      %2458 = vmatprep.subr.mxu0 0.0
      %2459 = vmatpush1.msra.mxu0 %v2428
      %2460 = vmatprep.subr.mxu0 0.0
      %2461 = vmatpush1.msra.mxu0 %v2429
      %2462 = vmatprep.subr.mxu0 0.0
      %2463 = vmatpush1.msra.mxu0 %v2430
      %2464 = vmatprep.subr.mxu0 0.0
      %2465 = vmatpush1.msra.mxu0 %v2431
      %2466 = vmatprep.subr.mxu0 0.0
      %2467 = vmatpush1.msra.mxu0 %v2432
      %2468 = vmatprep.subr.mxu0 0.0
      %2469 = vmatpush1.msra.mxu0 %v2433
      %2470 = vmatprep.subr.mxu0 0.0
      %2471 = vmatpush1.msra.mxu0 %v2434
      %2472 = vmatprep.subr.mxu0 0.0
      %2473 = vmatpush1.msra.mxu0 %v2435
      %2474 = vmatprep.subr.mxu0 0.0
      %2475 = vmatpush1.msra.mxu0 0.0
      %2476 = vmatprep.subr.mxu0 0.0
      %2477 = vmatpush1.msra.mxu0 0.0
      %2478 = vmatprep.subr.mxu0 0.0
      %2479 = vmatpush1.msra.mxu0 0.0
      %2480 = vmatprep.subr.mxu0 0.0
      %2481 = vmatpush1.msra.mxu0 0.0
      %2482 = vmatprep.subr.mxu0 0.0
      %2483 = vmatpush1.msra.mxu0 0.0
      %2484 = vmatprep.subr.mxu0 0.0
      %2485 = vmatpush1.msra.mxu0 0.0
      %2486 = vmatprep.subr.mxu0 0.0
      %2487 = vmatpush1.msra.mxu0 0.0
      %2488 = vmatprep.subr.mxu0 0.0
      %2489 = vmatpush1.msra.mxu0 0.0
      %2490 = vmatprep.subr.mxu0 0.0
      %2491 = vmatpush1.msra.mxu0 0.0
      %2492 = vmatprep.subr.mxu0 0.0
      %2493 = vmatpush1.msra.mxu0 0.0
      %2494 = vmatprep.subr.mxu0 0.0
      %2495 = vmatpush1.msra.mxu0 0.0
      %2496 = vmatprep.subr.mxu0 0.0
      %2497 = vmatpush1.msra.mxu0 0.0
      %2498 = vmatprep.subr.mxu0 0.0
      %2499 = vmatpush1.msra.mxu0 0.0
      %2500 = vmatprep.subr.mxu0 0.0
      %2501 = vmatpush1.msra.mxu0 0.0
      %2502 = vmatprep.subr.mxu0 0.0
      %2503 = vmatpush1.msra.mxu0 0.0
      %2504 = vmatprep.subr.mxu0 0.0
      %2505 = vmatpush1.msra.mxu0 0.0
      %2506 = vmatprep.subr.mxu0 0.0
      %2507 = vmatpush1.msra.mxu0 0.0
      %2508 = vmatprep.subr.mxu0 0.0
      %2509 = vmatpush1.msra.mxu0 0.0
      %2510 = vmatprep.subr.mxu0 0.0
      %2511 = vmatpush1.msra.mxu0 0.0
      %2512 = vmatprep.subr.mxu0 0.0
      %2513 = vmatpush1.msra.mxu0 0.0
      %2514 = vmatprep.subr.mxu0 0.0
      %2515 = vmatpush1.msra.mxu0 0.0
      %2516 = vmatprep.mubr.f32.mxu0 0.0
      %2517 = vmatmul.mubr.f32.gmra.mrb[0].mxu0 %v2436
      %v2518 = vpop.f32.mrb[0].mxu0
      %v2519 = vadd.f32 0.0, %v2518
      %v2520 = vpop.f32.mrb[0].mxu0
      %2521 = vmatprep.mubr.f32.mxu0 0.0
      %2522 = vmatmul.mubr.f32.gmra.mrb[0].mxu0 %v2438
      %v2523 = vpop.f32.mrb[0].mxu0
      %v2524 = vadd.f32 0.0, %v2523
      %v2525 = vpop.f32.mrb[0].mxu0
      %2526 = vmatprep.mubr.f32.mxu0 0.0
      %2527 = vmatmul.mubr.f32.gmra.mrb[0].mxu0 %v2440
      %v2528 = vpop.f32.mrb[0].mxu0
      %v2529 = vadd.f32 0.0, %v2528
      %v2530 = vpop.f32.mrb[0].mxu0
      %2531 = vmatprep.mubr.f32.mxu0 0.0
      %2532 = vmatmul.mubr.f32.gmra.mrb[0].mxu0 %v2442
      %v2533 = vpop.f32.mrb[0].mxu0
      %v2534 = vadd.f32 0.0, %v2533
      %v2535 = vpop.f32.mrb[0].mxu0
      %2536 = vmatprep.mubr.f32.mxu0 0.0
      %2537 = vmatmul.mubr.f32.gmra.mrb[0].mxu0 %v2444
      %v2538 = vpop.f32.mrb[0].mxu0
      %v2539 = vadd.f32 0.0, %v2538
      %v2540 = vpop.f32.mrb[0].mxu0
      %2541 = vmatprep.mubr.f32.mxu0 0.0
      %2542 = vmatmul.mubr.f32.gmra.mrb[0].mxu0 %v2446
      %v2543 = vpop.f32.mrb[0].mxu0
      %v2544 = vadd.f32 0.0, %v2543
      %v2545 = vpop.f32.mrb[0].mxu0
      %2546 = vmatprep.mubr.f32.mxu0 0.0
      %2547 = vmatmul.mubr.f32.gmra.mrb[0].mxu0 %v2448
      %v2548 = vpop.f32.mrb[0].mxu0
      %v2549 = vadd.f32 0.0, %v2548
      %v2550 = vpop.f32.mrb[0].mxu0
      %2551 = vmatprep.mubr.f32.mxu0 0.0
      %2552 = vmatmul.mubr.f32.gmra.mrb[0].mxu0 %v2450
      %v2553 = vpop.f32.mrb[0].mxu0
      %v2554 = vadd.f32 0.0, %v2553
      %v2555 = vpop.f32.mrb[0].mxu0
      %2556 = vdwg.mxu0
      %v2557 = vadd.f32 %v2396, %v2519
      %v2558 = vadd.f32 %v2397, %v2524
      %v2559 = vadd.f32 %v2398, %v2529
      %v2560 = vadd.f32 %v2399, %v2534
      %v2561 = vadd.f32 %v2400, %v2539
      %v2562 = vadd.f32 %v2401, %v2544
      %v2563 = vadd.f32 %v2402, %v2549
      %v2564 = vadd.f32 %v2403, %v2554
      %v2569 = vrot.slane %v2557, 1
      %v2570 = vrot.slane %v2559, 1
      %v2571 = vrot.slane %v2561, 1
      %v2572 = vrot.slane %v2563, 1
      %v2577 = vrot.slane %v2557, 2
      %v2578 = vrot.slane %v2559, 2
      %v2579 = vrot.slane %v2561, 2
      %v2580 = vrot.slane %v2563, 2
      %v2585 = vrot.slane %v2557, 3
      %v2586 = vrot.slane %v2559, 3
      %v2587 = vrot.slane %v2561, 3
      %v2588 = vrot.slane %v2563, 3
      %v2593 = vrot.slane %v2557, 4
      %v2594 = vrot.slane %v2559, 4
      %v2595 = vrot.slane %v2561, 4
      %v2596 = vrot.slane %v2563, 4
      %v2605 = vrot.slane %v2558, 5
      %v2606 = vrot.slane %v2560, 5
      %v2607 = vrot.slane %v2562, 5
      %v2608 = vrot.slane %v2564, 5
      %v2613 = vrot.slane %v2558, 6
      %v2614 = vrot.slane %v2560, 6
      %v2615 = vrot.slane %v2562, 6
      %v2616 = vrot.slane %v2564, 6
      %v2621 = vrot.slane %v2558, 7
      %v2622 = vrot.slane %v2560, 7
      %v2623 = vrot.slane %v2562, 7
      %v2624 = vrot.slane %v2564, 7
      %v2629 = vsel %vm384, %v2569, %v2577
      %v2630 = vsel %vm384, %v2570, %v2578
      %v2631 = vsel %vm384, %v2571, %v2579
      %v2632 = vsel %vm384, %v2572, %v2580
      %vm2633 = vcmask 1041408
      %v2634 = vsel %vm2633, %v2629, %v2585
      %v2635 = vsel %vm2633, %v2630, %v2586
      %v2636 = vsel %vm2633, %v2631, %v2587
      %v2637 = vsel %vm2633, %v2632, %v2588
      %vm2638 = vcmask 1042432
      %v2639 = vsel %vm2638, %v2634, %v2593
      %v2640 = vsel %vm2638, %v2635, %v2594
      %v2641 = vsel %vm2638, %v2636, %v2595
      %v2642 = vsel %vm2638, %v2637, %v2596
      %vm2643 = vcmask 1043456
      %v2644 = vsel %vm2643, %v2639, %v2605
      %v2645 = vsel %vm2643, %v2640, %v2606
      %v2646 = vsel %vm2643, %v2641, %v2607
      %v2647 = vsel %vm2643, %v2642, %v2608
      %vm2648 = vcmask 1044480
      %v2649 = vsel %vm2648, %v2644, %v2613
      %v2650 = vsel %vm2648, %v2645, %v2614
      %v2651 = vsel %vm2648, %v2646, %v2615
      %v2652 = vsel %vm2648, %v2647, %v2616
      %v2653 = vsel %vm726, %v2649, %v2621
      %v2654 = vsel %vm726, %v2650, %v2622
      %v2655 = vsel %vm726, %v2651, %v2623
      %v2656 = vsel %vm726, %v2652, %v2624
      %vm2657 = vcmask 522240
      %v2658 = vsel %vm2657, %v2653, 0.0
      %v2659 = vrot.slane %v2658, 4
      %v2660 = vadd.f32 %v2658, %v2659
      %v2661 = vrot.slane %v2660, 2
      %v2662 = vadd.f32 %v2660, %v2661
      %v2663 = vrot.slane %v2662, 1
      %v2664 = vadd.f32 %v2662, %v2663
      %v2665 = vsel %vm2657, %v2654, 0.0
      %v2666 = vrot.slane %v2665, 4
      %v2667 = vadd.f32 %v2665, %v2666
      %v2668 = vrot.slane %v2667, 2
      %v2669 = vadd.f32 %v2667, %v2668
      %v2670 = vrot.slane %v2669, 1
      %v2671 = vadd.f32 %v2669, %v2670
      %v2672 = vsel %vm2657, %v2655, 0.0
      %v2673 = vrot.slane %v2672, 4
      %v2674 = vadd.f32 %v2672, %v2673
      %v2675 = vrot.slane %v2674, 2
      %v2676 = vadd.f32 %v2674, %v2675
      %v2677 = vrot.slane %v2676, 1
      %v2678 = vadd.f32 %v2676, %v2677
      %v2679 = vsel %vm2657, %v2656, 0.0
      %v2680 = vrot.slane %v2679, 4
      %v2681 = vadd.f32 %v2679, %v2680
      %v2682 = vrot.slane %v2681, 2
      %v2683 = vadd.f32 %v2681, %v2682
      %v2684 = vrot.slane %v2683, 1
      %v2685 = vadd.f32 %v2683, %v2684
      %v2686 = vrcp.pop 7.0
      %v2687 = vmul.f32 %v2664, %v2686
      %v2688 = vmul.f32 %v2671, %v2686
      %v2689 = vmul.f32 %v2678, %v2686
      %v2690 = vmul.f32 %v2685, %v2686
      %v2691 = vsub.f32 %v2653, %v2687
      %v2692 = vsub.f32 %v2654, %v2688
      %v2693 = vsub.f32 %v2655, %v2689
      %v2694 = vsub.f32 %v2656, %v2690
      %v2695 = vmul.f32 %v2691, %v2691
      %v2696 = vmul.f32 %v2692, %v2692
      %v2697 = vmul.f32 %v2693, %v2693
      %v2698 = vmul.f32 %v2694, %v2694
      %v2699 = vsel %vm2657, %v2695, 0.0
      %v2700 = vrot.slane %v2699, 4
      %v2701 = vadd.f32 %v2699, %v2700
      %v2702 = vrot.slane %v2701, 2
      %v2703 = vadd.f32 %v2701, %v2702
      %v2704 = vrot.slane %v2703, 1
      %v2705 = vadd.f32 %v2703, %v2704
      %v2706 = vsel %vm2657, %v2696, 0.0
      %v2707 = vrot.slane %v2706, 4
      %v2708 = vadd.f32 %v2706, %v2707
      %v2709 = vrot.slane %v2708, 2
      %v2710 = vadd.f32 %v2708, %v2709
      %v2711 = vrot.slane %v2710, 1
      %v2712 = vadd.f32 %v2710, %v2711
      %v2713 = vsel %vm2657, %v2697, 0.0
      %v2714 = vrot.slane %v2713, 4
      %v2715 = vadd.f32 %v2713, %v2714
      %v2716 = vrot.slane %v2715, 2
      %v2717 = vadd.f32 %v2715, %v2716
      %v2718 = vrot.slane %v2717, 1
      %v2719 = vadd.f32 %v2717, %v2718
      %v2720 = vsel %vm2657, %v2698, 0.0
      %v2721 = vrot.slane %v2720, 4
      %v2722 = vadd.f32 %v2720, %v2721
      %v2723 = vrot.slane %v2722, 2
      %v2724 = vadd.f32 %v2722, %v2723
      %v2725 = vrot.slane %v2724, 1
      %v2726 = vadd.f32 %v2724, %v2725
      %v2727 = vmul.f32 %v2705, %v2686
      %v2728 = vmul.f32 %v2712, %v2686
      %v2729 = vmul.f32 %v2719, %v2686
      %v2730 = vmul.f32 %v2726, %v2686
      %v2731 = vadd.f32 %v2727, 1e-05
      %v2732 = vadd.f32 %v2728, 1e-05
      %v2733 = vadd.f32 %v2729, 1e-05
      %v2734 = vadd.f32 %v2730, 1e-05
      %v2735 = vrsqrt.pop %v2731
      %v2736 = vrsqrt.pop %v2732
      %v2737 = vrsqrt.pop %v2733
      %v2738 = vrsqrt.pop %v2734
      %v2739 = vmul.f32 %v2691, %v2735
      %v2740 = vmul.f32 %v2692, %v2736
      %v2741 = vmul.f32 %v2693, %v2737
      %v2742 = vmul.f32 %v2694, %v2738
      %v2743 = vld [vmem:[#allocation2] sm:$0x1]
      %vm2744 = vcmp.ge.f32.partialorder %v2739, 0.0
      %vm2745 = vcmp.ge.f32.partialorder %v2740, 0.0
      %vm2746 = vcmp.ge.f32.partialorder %v2741, 0.0
      %vm2747 = vcmp.ge.f32.partialorder %v2742, 0.0
      %v2749 = vlaneseq
      %v2750 = vshrl.u32 %v2749, 7
      %v2751 = vsub.s32 0, %v2750
      %v2752 = vrot.slane %v2743, %v2751
      %2753 = vset.pattern.permute.xlu0 0
      %2754 = vperm.xlu0 %2753, %v2752
      %v2755 = vpop.permute.xlu0 %2754
      %v2757 = vmul.f32 %v2755, %v2739
      %v2758 = vmul.f32 %v2755, %v2740
      %v2759 = vmul.f32 %v2755, %v2741
      %v2760 = vmul.f32 %v2755, %v2742
      %v2761 = vsel %vm2744, %v2739, %v2757
      %v2762 = vsel %vm2745, %v2740, %v2758
      %v2763 = vsel %vm2746, %v2741, %v2759
      %v2764 = vsel %vm2747, %v2742, %v2760
      %2765 = vst.msk [vmem:[%s366] sm:$0x7f] %vm2657, %v2761
      %2766 = vst.msk [vmem:[%s366 + $0x8] sm:$0x7f] %vm2657, %v2762
      %2767 = vst.msk [vmem:[%s366 + $0x10] sm:$0x7f] %vm2657, %v2763
      %2768 = vst.msk [vmem:[%s366 + $0x18] sm:$0x7f] %vm2657, %v2764
      %s2769 = smul.u32 4, %s23
      %p2770 = scmp.lt.s32.totalorder %s2769, 7
      %s2771 = scalar_select %p2770, %s2769, 7
      %s2772 = smul.addr %s2771, 8
      %s2773 = scalar_lea.vmem %s10, %s2772
      // Predicated region
      $region61: #{tpu_custom_call.1} parent=59 // pred_check
        %p2774 = pneg %p256
      $region62: #{tpu_custom_call.1} parent=59 // pred_check_branch
        %2776 = sbr.rel (%p2774) target = $region64
      $region63: #{tpu_custom_call.1} parent=59 // pred_region
        %s2777 = smul.u32 4, %s23
      $region64: #{tpu_custom_call.1} parent=59 // pred_fallthru
        _
    $region60: #{tpu_custom_call.1} parent=5 // pred_fallthru
      _
    %p2778 = scmp.le.s32.totalorder 2, %s18
    // Predicated region
    $region65: #{tpu_custom_call.1} parent=5 // pred_check
      %p2779 = pneg %p2778
    $region66: #{tpu_custom_call.1} parent=5 // pred_check_branch
      %2781 = sbr.rel (%p2779) target = $region68
    $region67: #{tpu_custom_call.1} parent=5 // pred_region
      %s2782 = ssub.s32 %s18, 2
      // Predicated region
      $region69: #{tpu_custom_call.1} parent=67 // pred_check
        %p2783 = pneg %p262
      $region70: #{tpu_custom_call.1} parent=67 // pred_check_branch
        %2785 = sbr.rel (%p2783) target = $region72
      $region71: #{tpu_custom_call.1} parent=67 // pred_region
        %s2786 = smul.u32 4, %s24
        %p2787 = scmp.lt.s32.totalorder %s2786, 7
        %s2788 = scalar_select %p2787, %s2786, 7
        %s2789 = smul.addr %s2788, 8
        %s2790 = scalar_lea.vmem %s10, %s2789
      $region72: #{tpu_custom_call.1} parent=67 // pred_fallthru
        _
    $region68: #{tpu_custom_call.1} parent=5 // pred_fallthru
      _
  $region6: #{tpu_custom_call.1} parent=0 // loop_footer
    %s22 = sadd.s32 1, %s18
  $region7: #{tpu_custom_call.1} parent=0 // loop_footer_branch
    %17 = sbr.rel target = $region3
  $region8: #{tpu_custom_call.1} parent=0 // loop_exit
    _

</llo_original>
